<compile_context>
chip_gen: v7x
topology: tpu7x:2x2x1
jax: 0.10.0
libtpu: 0.0.40
codegen_flags: <defaults>
</compile_context>

<pallas_src>
import functools

import jax
import jax.numpy as jnp
import numpy as np
from jax import lax
from jax.experimental import pallas as pl
from jax.experimental.pallas import tpu as pltpu

OPAD = 128  # lane-dense padded output width (>= num_question + num_answer outputs)


# ----------------------------- Pallas kernel ------------------------------ #
def _quest_lstm_kernel(idsq_ref, idsa_ref, tab_ref, w_hh_ref, b_ref,
                       w_lin_ref, b_lin_ref, out_ref):
    """Fused two-head LSTM forward (Bp = padded batch, H = hidden size).

    idsq_ref:  (T*Bp, 1) int32   question ids, time-major (row = t*Bp + b)
    idsa_ref:  (T*Bp, 1) int32   answer ids, offset by +V (select rows V:2V)
    tab_ref:   (2V, 8H)          block-diag  emb @ W_ih  for both heads,
                                 gate layout [i_q,i_a,f_q,f_a,g_q,g_a,o_q,o_a],
                                 g columns pre-scaled by 2 (tanh-from-sigmoid)
    w_hh_ref:  (2H, 8H)          block-diag hidden->gate weights (same layout)
    b_ref:     (1, 8H)           combined biases (same layout / scaling)
    w_lin_ref: (2H, OPAD)        block-diag output linear weight, zero padded
    b_lin_ref: (1, OPAD)         output linear bias, zero padded
    out_ref:   (Bp, OPAD)        sigmoid([q_logits | a_logits | pad])
    """
    TB = idsq_ref.shape[0]
    V2 = tab_ref.shape[0]
    H8 = tab_ref.shape[1]
    H = H8 // 8
    BP = out_ref.shape[0]
    T = TB // BP

    # ---- Hoisted: embedding gather fused with the input projection ------- #
    # One-hot row selection over the stacked (2V, 8H) table == exact per-head
    # embedding lookup followed by x @ W_ih, for every time step and both
    # heads, in a single MXU matmul.
    # TODO(synk): for realistic vocab sizes keep this table in HBM
    # (memory_space=pl.ANY) and DMA-gather rows instead of the one-hot matmul
    # (v7x has only 64 MiB VMEM).
    iota_v = lax.broadcasted_iota(jnp.int32, (TB, V2), 1)
    onehot = ((idsq_ref[...] == iota_v).astype(jnp.float32)
              + (idsa_ref[...] == iota_v).astype(jnp.float32))
    xg = (jnp.dot(onehot, tab_ref[...], preferred_element_type=jnp.float32)
          + b_ref[...])                                           # (T*Bp, 8H)

    w_hh = w_hh_ref[...]                                          # (2H, 8H)

    # Hoisted gate-activation constants: i/f/o lanes -> sigmoid(x),
    # g lanes -> tanh(x) = 2*sigmoid(2x) - 1 (the 2x is baked into weights).
    lane = lax.broadcasted_iota(jnp.int32, (BP, H8), 1)
    is_g = (lane >= 4 * H) & (lane < 6 * H)
    post_mul = jnp.where(is_g, 2.0, 1.0).astype(jnp.float32)
    post_add = jnp.where(is_g, -1.0, 0.0).astype(jnp.float32)

    h = jnp.zeros((BP, 2 * H), jnp.float32)    # [h_q | h_a]
    c = jnp.zeros((BP, 2 * H), jnp.float32)    # [c_q | c_a]
    for t in range(T):                         # T = 8: fully unrolled
        gates = (xg[t * BP:(t + 1) * BP, :]    # (8,128)-tile-aligned slice
                 + jnp.dot(h, w_hh, preferred_element_type=jnp.float32))
        s = jax.nn.sigmoid(gates)              # single EUP pass per step
        act = s * post_mul + post_add
        i_g = act[:, 0 * H:2 * H]
        f_g = act[:, 2 * H:4 * H]
        g_g = act[:, 4 * H:6 * H]
        o_g = act[:, 6 * H:8 * H]
        c = f_g * c + i_g * g_g
        h = o_g * jnp.tanh(c)

    logits = (jnp.dot(h, w_lin_ref[...], preferred_element_type=jnp.float32)
              + b_lin_ref[...])                                   # (Bp, OPAD)
    out_ref[...] = jax.nn.sigmoid(logits)


def quest_pallas(ids_q, ids_a, tab, w_hh, b, w_lin, b_lin, *, batch_padded):
    """Single pallas_call, no grid: both heads fused into one recurrence."""
    vmem = pl.BlockSpec(memory_space=pltpu.MemorySpace.VMEM)
    return pl.pallas_call(
        _quest_lstm_kernel,
        out_shape=jax.ShapeDtypeStruct((batch_padded, OPAD), jnp.float32),
        in_specs=[vmem] * 7,
        out_specs=vmem,
    )(ids_q, ids_a, tab, w_hh, b, w_lin, b_lin)


# --------------------------- Model (JAX wrapper) --------------------------- #
def init_params(key, vocab_size, embedding_dim, hidden_size,
                num_question_output, num_answer_output):
    """Deterministic synthetic init (uniform +-1/sqrt(H), like PyTorch LSTM)."""
    s = 1.0 / np.sqrt(hidden_size)

    def u(k, shape):
        return jax.random.uniform(k, shape, jnp.float32, -s, s)

    def head(kz, num_out):
        k = jax.random.split(kz, 6)
        return dict(
            embed=jax.random.normal(k[0], (vocab_size, embedding_dim),
                                    jnp.float32),
            w_ih=u(k[1], (embedding_dim, 4 * hidden_size)),
            w_hh=u(k[2], (hidden_size, 4 * hidden_size)),
            b=u(k[3], (1, 4 * hidden_size)),           # b_ih + b_hh combined
            w_lin=u(k[4], (hidden_size, num_out)),
            b_lin=u(k[5], (1, num_out)),
        )

    kq, ka = jax.random.split(key)
    return dict(question=head(kq, num_question_output),
                answer=head(ka, num_answer_output))


def pack_params(params):
    """Fuse both heads into block-diagonal, gate-interleaved packed tensors."""
    q, a = params["question"], params["answer"]
    H = q["w_hh"].shape[0]
    Oq = q["w_lin"].shape[1]
    Oa = a["w_lin"].shape[1]
    assert Oq + Oa <= OPAD

    def interleave(mq, ma):
        # (..., 4H) per head with gate order [i,f,g,o] ->
        # (..., 8H) with layout [i_q, i_a, f_q, f_a, g_q, g_a, o_q, o_a].
        parts = []
        for g in range(4):
            parts += [mq[..., g * H:(g + 1) * H], ma[..., g * H:(g + 1) * H]]
        return jnp.concatenate(parts, axis=-1)

    # Fold embedding into the input projection (one-hot row selection in the
    # kernel makes this an exact embedding lookup + x @ W_ih).
    tab_q = q["embed"] @ q["w_ih"]                      # (V, 4H)
    tab_a = a["embed"] @ a["w_ih"]
    zv = jnp.zeros_like(tab_q)
    tab = jnp.concatenate([interleave(tab_q, zv),
                           interleave(zv, tab_a)], axis=0)          # (2V, 8H)

    zh = jnp.zeros((H, 4 * H), jnp.float32)
    w_hh = jnp.concatenate([interleave(q["w_hh"], zh),
                            interleave(zh, a["w_hh"])], axis=0)     # (2H, 8H)
    b = interleave(q["b"], a["b"])                                  # (1, 8H)

    # Bake the 2x of tanh(x) = 2*sigmoid(2x) - 1 into the g-gate columns.
    # Power-of-two scaling is exact, so this does not change the math.
    gate_scale = jnp.ones((8 * H,), jnp.float32).at[4 * H:6 * H].set(2.0)
    tab, w_hh, b = tab * gate_scale, w_hh * gate_scale, b * gate_scale

    w_lin = jnp.zeros((2 * H, OPAD), jnp.float32)
    w_lin = w_lin.at[:H, :Oq].set(q["w_lin"]).at[H:, Oq:Oq + Oa].set(a["w_lin"])
    b_lin = jnp.zeros((1, OPAD), jnp.float32)
    b_lin = b_lin.at[:, :Oq].set(q["b_lin"]).at[:, Oq:Oq + Oa].set(a["b_lin"])

    return dict(tab=tab, w_hh=w_hh, b=b, w_lin=w_lin, b_lin=b_lin)


@functools.partial(jax.jit, static_argnames=("num_q_out", "num_a_out"))
def quest_forward(packed, question_ids, answer_ids, *, num_q_out, num_a_out):
    """question_ids/answer_ids: (B, T) int32. Returns (B, Oq + Oa) float32."""
    B, T = question_ids.shape
    V = packed["tab"].shape[0] // 2
    BP = max(8, ((B + 7) // 8) * 8)        # pad batch to full sublanes

    def prep(ids, offset):
        # Clamp out-of-range ids (matches jnp.take clamping in the reference;
        # torch.nn.Embedding would raise on OOB ids).
        ids = jnp.clip(ids.astype(jnp.int32), 0, V - 1)
        tm = ids.T                                     # (T, B) time-major
        tm = jnp.pad(tm, ((0, 0), (0, BP - B)))        # pad batch with id 0
        return tm.reshape(T * BP, 1) + offset

    out = quest_pallas(prep(question_ids, 0), prep(answer_ids, V),
                       packed["tab"], packed["w_hh"], packed["b"],
                       packed["w_lin"], packed["b_lin"], batch_padded=BP)
    # Columns [0:Oq+Oa] are already torch.cat((q_pred, a_pred), dim=1);
    # padded batch rows / lanes are sliced off.
    return out[:B, :num_q_out + num_a_out]


# ------------------------- Pure-JAX reference check ------------------------ #
def _reference_head(p, ids):
    emb = jnp.take(p["embed"], ids.T, axis=0)              # (T, B, E)
    H = p["w_hh"].shape[0]
    B = ids.shape[0]

    def step(carry, x_t):
        h, c = carry
        gates = x_t @ p["w_ih"] + h @ p["w_hh"] + p["b"]
        i = jax.nn.sigmoid(gates[:, 0 * H:1 * H])
        f = jax.nn.sigmoid(gates[:, 1 * H:2 * H])
        g = jnp.tanh(gates[:, 2 * H:3 * H])
        o = jax.nn.sigmoid(gates[:, 3 * H:4 * H])
        c = f * c + i * g
        h = o * jnp.tanh(c)
        return (h, c), None

    h0 = jnp.zeros((B, H), jnp.float32)
    (h, _), _ = jax.lax.scan(step, (h0, h0), emb)
    return jax.nn.sigmoid(h @ p["w_lin"] + p["b_lin"])


def reference_forward(params, question_ids, answer_ids):
    q = _reference_head(params["question"], question_ids)
    a = _reference_head(params["answer"], answer_ids)
    return jnp.concatenate([q, a], axis=1)


# ---------------------------------- main ----------------------------------- #
if __name__ == "__main__":
    VOCAB = 50
    EMBED = 16
    HIDDEN = 32
    LSTM_LAYERS = 1        # forward pass uses (1, B, H) initial state => 1 layer
    NUM_Q_OUT = 4
    NUM_A_OUT = 6
    BATCH = 2
    SEQ = 8

    key = jax.random.PRNGKey(0)
    kp, kq, ka = jax.random.split(key, 3)

    params = init_params(kp, VOCAB, EMBED, HIDDEN, NUM_Q_OUT, NUM_A_OUT)
    packed = pack_params(params)

    question = jax.random.randint(kq, (BATCH, SEQ), 0, VOCAB, dtype=jnp.int32)
    answer = jax.random.randint(ka, (BATCH, SEQ), 0, VOCAB, dtype=jnp.int32)

    out = quest_forward(packed, question, answer,
                        num_q_out=NUM_Q_OUT, num_a_out=NUM_A_OUT)
    out = jax.block_until_ready(out)

    ref = jax.block_until_ready(reference_forward(params, question, answer))
    np.testing.assert_allclose(np.asarray(out), np.asarray(ref),
                               rtol=5e-5, atol=2e-5)
    assert out.shape == (BATCH, NUM_Q_OUT + NUM_A_OUT)

    print("KERNEL_OK")
</pallas_src>

<mosaic_0001>
module attributes {stable_mosaic.version = 11 : i64} {
  func.func @_quest_lstm_kernel(%arg0: memref<64x1xi32, #tpu.memory_space<vmem>>, %arg1: memref<64x1xi32, #tpu.memory_space<vmem>>, %arg2: memref<100x256xf32, #tpu.memory_space<vmem>>, %arg3: memref<64x256xf32, #tpu.memory_space<vmem>>, %arg4: memref<1x256xf32, #tpu.memory_space<vmem>>, %arg5: memref<64x128xf32, #tpu.memory_space<vmem>>, %arg6: memref<1x128xf32, #tpu.memory_space<vmem>>, %arg7: memref<8x128xf32, #tpu.memory_space<vmem>>) attributes {dimension_semantics = [], scalar_prefetch = 0 : i64, scratch_operands = 0 : i64, tpu.core_type = #tpu.core_type<tc>} {
    %0 = tpu.iota {dimensions = array<i32: 1>} : vector<64x100xi32>
    %c0 = arith.constant 0 : index
    %c0_0 = arith.constant 0 : index
    %1 = vector.load %arg0[%c0, %c0_0] : memref<64x1xi32, #tpu.memory_space<vmem>>, vector<64x1xi32>
    %2 = vector.broadcast %1 : vector<64x1xi32> to vector<64x100xi32>
    %3 = arith.cmpi eq, %2, %0 : vector<64x100xi32>
    %4 = arith.extui %3 : vector<64x100xi1> to vector<64x100xi32>
    %5 = arith.sitofp %4 : vector<64x100xi32> to vector<64x100xf32>
    %c0_1 = arith.constant 0 : index
    %c0_2 = arith.constant 0 : index
    %6 = vector.load %arg1[%c0_1, %c0_2] : memref<64x1xi32, #tpu.memory_space<vmem>>, vector<64x1xi32>
    %7 = vector.broadcast %6 : vector<64x1xi32> to vector<64x100xi32>
    %8 = arith.cmpi eq, %7, %0 : vector<64x100xi32>
    %9 = arith.extui %8 : vector<64x100xi1> to vector<64x100xi32>
    %10 = arith.sitofp %9 : vector<64x100xi32> to vector<64x100xf32>
    %11 = arith.addf %5, %10 : vector<64x100xf32>
    %c0_3 = arith.constant 0 : index
    %c0_4 = arith.constant 0 : index
    %12 = vector.load %arg2[%c0_3, %c0_4] : memref<100x256xf32, #tpu.memory_space<vmem>>, vector<100x256xf32>
    %cst = arith.constant dense<0.000000e+00> : vector<64x256xf32>
    %13 = tpu.matmul %11, %12, %cst {dimension_numbers = #tpu.dot_dimension_numbers<[1], [0], [0], [1], [0, 0, 1, 1], [], []>} : vector<64x100xf32>, vector<100x256xf32>, vector<64x256xf32> -> vector<64x256xf32>
    %c0_5 = arith.constant 0 : index
    %c0_6 = arith.constant 0 : index
    %14 = vector.load %arg4[%c0_5, %c0_6] : memref<1x256xf32, #tpu.memory_space<vmem>>, vector<1x256xf32>
    %15 = vector.broadcast %14 : vector<1x256xf32> to vector<64x256xf32>
    %16 = arith.addf %13, %15 : vector<64x256xf32>
    %c0_7 = arith.constant 0 : index
    %c0_8 = arith.constant 0 : index
    %17 = vector.load %arg3[%c0_7, %c0_8] : memref<64x256xf32, #tpu.memory_space<vmem>>, vector<64x256xf32>
    %18 = tpu.iota {dimensions = array<i32: 1>} : vector<8x256xi32>
    %c128_i32 = arith.constant 128 : i32
    %19 = vector.broadcast %c128_i32 : i32 to vector<8x256xi32>
    %20 = arith.cmpi sge, %18, %19 : vector<8x256xi32>
    %c192_i32 = arith.constant 192 : i32
    %21 = vector.broadcast %c192_i32 : i32 to vector<8x256xi32>
    %22 = arith.cmpi slt, %18, %21 : vector<8x256xi32>
    %23 = arith.andi %20, %22 : vector<8x256xi1>
    %cst_9 = arith.constant 2.000000e+00 : f32
    %cst_10 = arith.constant 1.000000e+00 : f32
    %24 = vector.broadcast %cst_9 : f32 to vector<8x256xf32>
    %25 = vector.broadcast %cst_10 : f32 to vector<8x256xf32>
    %26 = arith.select %23, %24, %25 : vector<8x256xi1>, vector<8x256xf32>
    %cst_11 = arith.constant -1.000000e+00 : f32
    %cst_12 = arith.constant 0.000000e+00 : f32
    %27 = vector.broadcast %cst_11 : f32 to vector<8x256xf32>
    %28 = vector.broadcast %cst_12 : f32 to vector<8x256xf32>
    %29 = arith.select %23, %27, %28 : vector<8x256xi1>, vector<8x256xf32>
    %cst_13 = arith.constant 0.000000e+00 : f32
    %30 = vector.broadcast %cst_13 : f32 to vector<8x64xf32>
    %cst_14 = arith.constant 0.000000e+00 : f32
    %31 = vector.broadcast %cst_14 : f32 to vector<8x64xf32>
    %32 = vector.extract_strided_slice %16 {offsets = [0, 0], sizes = [8, 256], strides = [1, 1]} : vector<64x256xf32> to vector<8x256xf32>
    %cst_15 = arith.constant dense<0.000000e+00> : vector<8x256xf32>
    %33 = tpu.matmul %30, %17, %cst_15 {dimension_numbers = #tpu.dot_dimension_numbers<[1], [0], [0], [1], [0, 0, 1, 1], [], []>} : vector<8x64xf32>, vector<64x256xf32>, vector<8x256xf32> -> vector<8x256xf32>
    %34 = arith.addf %32, %33 : vector<8x256xf32>
    %35 = arith.negf %34 : vector<8x256xf32>
    %36 = math.exp %35 : vector<8x256xf32>
    %cst_16 = arith.constant 1.000000e+00 : f32
    %37 = vector.broadcast %cst_16 : f32 to vector<8x256xf32>
    %38 = arith.addf %37, %36 : vector<8x256xf32>
    %39 = arith.divf %37, %38 : vector<8x256xf32>
    %40 = arith.mulf %39, %26 : vector<8x256xf32>
    %41 = arith.addf %40, %29 : vector<8x256xf32>
    %42 = vector.extract_strided_slice %41 {offsets = [0, 0], sizes = [8, 64], strides = [1, 1]} : vector<8x256xf32> to vector<8x64xf32>
    %43 = vector.extract_strided_slice %41 {offsets = [0, 64], sizes = [8, 64], strides = [1, 1]} : vector<8x256xf32> to vector<8x64xf32>
    %44 = vector.extract_strided_slice %41 {offsets = [0, 128], sizes = [8, 64], strides = [1, 1]} : vector<8x256xf32> to vector<8x64xf32>
    %45 = vector.extract_strided_slice %41 {offsets = [0, 192], sizes = [8, 64], strides = [1, 1]} : vector<8x256xf32> to vector<8x64xf32>
    %46 = arith.mulf %43, %31 : vector<8x64xf32>
    %47 = arith.mulf %42, %44 : vector<8x64xf32>
    %48 = arith.addf %46, %47 : vector<8x64xf32>
    %49 = math.tanh %48 : vector<8x64xf32>
    %50 = arith.mulf %45, %49 : vector<8x64xf32>
    %51 = vector.extract_strided_slice %16 {offsets = [8, 0], sizes = [8, 256], strides = [1, 1]} : vector<64x256xf32> to vector<8x256xf32>
    %cst_17 = arith.constant dense<0.000000e+00> : vector<8x256xf32>
    %52 = tpu.matmul %50, %17, %cst_17 {dimension_numbers = #tpu.dot_dimension_numbers<[1], [0], [0], [1], [0, 0, 1, 1], [], []>} : vector<8x64xf32>, vector<64x256xf32>, vector<8x256xf32> -> vector<8x256xf32>
    %53 = arith.addf %51, %52 : vector<8x256xf32>
    %54 = arith.negf %53 : vector<8x256xf32>
    %55 = math.exp %54 : vector<8x256xf32>
    %cst_18 = arith.constant 1.000000e+00 : f32
    %56 = vector.broadcast %cst_18 : f32 to vector<8x256xf32>
    %57 = arith.addf %56, %55 : vector<8x256xf32>
    %58 = arith.divf %56, %57 : vector<8x256xf32>
    %59 = arith.mulf %58, %26 : vector<8x256xf32>
    %60 = arith.addf %59, %29 : vector<8x256xf32>
    %61 = vector.extract_strided_slice %60 {offsets = [0, 0], sizes = [8, 64], strides = [1, 1]} : vector<8x256xf32> to vector<8x64xf32>
    %62 = vector.extract_strided_slice %60 {offsets = [0, 64], sizes = [8, 64], strides = [1, 1]} : vector<8x256xf32> to vector<8x64xf32>
    %63 = vector.extract_strided_slice %60 {offsets = [0, 128], sizes = [8, 64], strides = [1, 1]} : vector<8x256xf32> to vector<8x64xf32>
    %64 = vector.extract_strided_slice %60 {offsets = [0, 192], sizes = [8, 64], strides = [1, 1]} : vector<8x256xf32> to vector<8x64xf32>
    %65 = arith.mulf %62, %48 : vector<8x64xf32>
    %66 = arith.mulf %61, %63 : vector<8x64xf32>
    %67 = arith.addf %65, %66 : vector<8x64xf32>
    %68 = math.tanh %67 : vector<8x64xf32>
    %69 = arith.mulf %64, %68 : vector<8x64xf32>
    %70 = vector.extract_strided_slice %16 {offsets = [16, 0], sizes = [8, 256], strides = [1, 1]} : vector<64x256xf32> to vector<8x256xf32>
    %cst_19 = arith.constant dense<0.000000e+00> : vector<8x256xf32>
    %71 = tpu.matmul %69, %17, %cst_19 {dimension_numbers = #tpu.dot_dimension_numbers<[1], [0], [0], [1], [0, 0, 1, 1], [], []>} : vector<8x64xf32>, vector<64x256xf32>, vector<8x256xf32> -> vector<8x256xf32>
    %72 = arith.addf %70, %71 : vector<8x256xf32>
    %73 = arith.negf %72 : vector<8x256xf32>
    %74 = math.exp %73 : vector<8x256xf32>
    %cst_20 = arith.constant 1.000000e+00 : f32
    %75 = vector.broadcast %cst_20 : f32 to vector<8x256xf32>
    %76 = arith.addf %75, %74 : vector<8x256xf32>
    %77 = arith.divf %75, %76 : vector<8x256xf32>
    %78 = arith.mulf %77, %26 : vector<8x256xf32>
    %79 = arith.addf %78, %29 : vector<8x256xf32>
    %80 = vector.extract_strided_slice %79 {offsets = [0, 0], sizes = [8, 64], strides = [1, 1]} : vector<8x256xf32> to vector<8x64xf32>
    %81 = vector.extract_strided_slice %79 {offsets = [0, 64], sizes = [8, 64], strides = [1, 1]} : vector<8x256xf32> to vector<8x64xf32>
    %82 = vector.extract_strided_slice %79 {offsets = [0, 128], sizes = [8, 64], strides = [1, 1]} : vector<8x256xf32> to vector<8x64xf32>
    %83 = vector.extract_strided_slice %79 {offsets = [0, 192], sizes = [8, 64], strides = [1, 1]} : vector<8x256xf32> to vector<8x64xf32>
    %84 = arith.mulf %81, %67 : vector<8x64xf32>
    %85 = arith.mulf %80, %82 : vector<8x64xf32>
    %86 = arith.addf %84, %85 : vector<8x64xf32>
    %87 = math.tanh %86 : vector<8x64xf32>
    %88 = arith.mulf %83, %87 : vector<8x64xf32>
    %89 = vector.extract_strided_slice %16 {offsets = [24, 0], sizes = [8, 256], strides = [1, 1]} : vector<64x256xf32> to vector<8x256xf32>
    %cst_21 = arith.constant dense<0.000000e+00> : vector<8x256xf32>
    %90 = tpu.matmul %88, %17, %cst_21 {dimension_numbers = #tpu.dot_dimension_numbers<[1], [0], [0], [1], [0, 0, 1, 1], [], []>} : vector<8x64xf32>, vector<64x256xf32>, vector<8x256xf32> -> vector<8x256xf32>
    %91 = arith.addf %89, %90 : vector<8x256xf32>
    %92 = arith.negf %91 : vector<8x256xf32>
    %93 = math.exp %92 : vector<8x256xf32>
    %cst_22 = arith.constant 1.000000e+00 : f32
    %94 = vector.broadcast %cst_22 : f32 to vector<8x256xf32>
    %95 = arith.addf %94, %93 : vector<8x256xf32>
    %96 = arith.divf %94, %95 : vector<8x256xf32>
    %97 = arith.mulf %96, %26 : vector<8x256xf32>
    %98 = arith.addf %97, %29 : vector<8x256xf32>
    %99 = vector.extract_strided_slice %98 {offsets = [0, 0], sizes = [8, 64], strides = [1, 1]} : vector<8x256xf32> to vector<8x64xf32>
    %100 = vector.extract_strided_slice %98 {offsets = [0, 64], sizes = [8, 64], strides = [1, 1]} : vector<8x256xf32> to vector<8x64xf32>
    %101 = vector.extract_strided_slice %98 {offsets = [0, 128], sizes = [8, 64], strides = [1, 1]} : vector<8x256xf32> to vector<8x64xf32>
    %102 = vector.extract_strided_slice %98 {offsets = [0, 192], sizes = [8, 64], strides = [1, 1]} : vector<8x256xf32> to vector<8x64xf32>
    %103 = arith.mulf %100, %86 : vector<8x64xf32>
    %104 = arith.mulf %99, %101 : vector<8x64xf32>
    %105 = arith.addf %103, %104 : vector<8x64xf32>
    %106 = math.tanh %105 : vector<8x64xf32>
    %107 = arith.mulf %102, %106 : vector<8x64xf32>
    %108 = vector.extract_strided_slice %16 {offsets = [32, 0], sizes = [8, 256], strides = [1, 1]} : vector<64x256xf32> to vector<8x256xf32>
    %cst_23 = arith.constant dense<0.000000e+00> : vector<8x256xf32>
    %109 = tpu.matmul %107, %17, %cst_23 {dimension_numbers = #tpu.dot_dimension_numbers<[1], [0], [0], [1], [0, 0, 1, 1], [], []>} : vector<8x64xf32>, vector<64x256xf32>, vector<8x256xf32> -> vector<8x256xf32>
    %110 = arith.addf %108, %109 : vector<8x256xf32>
    %111 = arith.negf %110 : vector<8x256xf32>
    %112 = math.exp %111 : vector<8x256xf32>
    %cst_24 = arith.constant 1.000000e+00 : f32
    %113 = vector.broadcast %cst_24 : f32 to vector<8x256xf32>
    %114 = arith.addf %113, %112 : vector<8x256xf32>
    %115 = arith.divf %113, %114 : vector<8x256xf32>
    %116 = arith.mulf %115, %26 : vector<8x256xf32>
    %117 = arith.addf %116, %29 : vector<8x256xf32>
    %118 = vector.extract_strided_slice %117 {offsets = [0, 0], sizes = [8, 64], strides = [1, 1]} : vector<8x256xf32> to vector<8x64xf32>
    %119 = vector.extract_strided_slice %117 {offsets = [0, 64], sizes = [8, 64], strides = [1, 1]} : vector<8x256xf32> to vector<8x64xf32>
    %120 = vector.extract_strided_slice %117 {offsets = [0, 128], sizes = [8, 64], strides = [1, 1]} : vector<8x256xf32> to vector<8x64xf32>
    %121 = vector.extract_strided_slice %117 {offsets = [0, 192], sizes = [8, 64], strides = [1, 1]} : vector<8x256xf32> to vector<8x64xf32>
    %122 = arith.mulf %119, %105 : vector<8x64xf32>
    %123 = arith.mulf %118, %120 : vector<8x64xf32>
    %124 = arith.addf %122, %123 : vector<8x64xf32>
    %125 = math.tanh %124 : vector<8x64xf32>
    %126 = arith.mulf %121, %125 : vector<8x64xf32>
    %127 = vector.extract_strided_slice %16 {offsets = [40, 0], sizes = [8, 256], strides = [1, 1]} : vector<64x256xf32> to vector<8x256xf32>
    %cst_25 = arith.constant dense<0.000000e+00> : vector<8x256xf32>
    %128 = tpu.matmul %126, %17, %cst_25 {dimension_numbers = #tpu.dot_dimension_numbers<[1], [0], [0], [1], [0, 0, 1, 1], [], []>} : vector<8x64xf32>, vector<64x256xf32>, vector<8x256xf32> -> vector<8x256xf32>
    %129 = arith.addf %127, %128 : vector<8x256xf32>
    %130 = arith.negf %129 : vector<8x256xf32>
    %131 = math.exp %130 : vector<8x256xf32>
    %cst_26 = arith.constant 1.000000e+00 : f32
    %132 = vector.broadcast %cst_26 : f32 to vector<8x256xf32>
    %133 = arith.addf %132, %131 : vector<8x256xf32>
    %134 = arith.divf %132, %133 : vector<8x256xf32>
    %135 = arith.mulf %134, %26 : vector<8x256xf32>
    %136 = arith.addf %135, %29 : vector<8x256xf32>
    %137 = vector.extract_strided_slice %136 {offsets = [0, 0], sizes = [8, 64], strides = [1, 1]} : vector<8x256xf32> to vector<8x64xf32>
    %138 = vector.extract_strided_slice %136 {offsets = [0, 64], sizes = [8, 64], strides = [1, 1]} : vector<8x256xf32> to vector<8x64xf32>
    %139 = vector.extract_strided_slice %136 {offsets = [0, 128], sizes = [8, 64], strides = [1, 1]} : vector<8x256xf32> to vector<8x64xf32>
    %140 = vector.extract_strided_slice %136 {offsets = [0, 192], sizes = [8, 64], strides = [1, 1]} : vector<8x256xf32> to vector<8x64xf32>
    %141 = arith.mulf %138, %124 : vector<8x64xf32>
    %142 = arith.mulf %137, %139 : vector<8x64xf32>
    %143 = arith.addf %141, %142 : vector<8x64xf32>
    %144 = math.tanh %143 : vector<8x64xf32>
    %145 = arith.mulf %140, %144 : vector<8x64xf32>
    %146 = vector.extract_strided_slice %16 {offsets = [48, 0], sizes = [8, 256], strides = [1, 1]} : vector<64x256xf32> to vector<8x256xf32>
    %cst_27 = arith.constant dense<0.000000e+00> : vector<8x256xf32>
    %147 = tpu.matmul %145, %17, %cst_27 {dimension_numbers = #tpu.dot_dimension_numbers<[1], [0], [0], [1], [0, 0, 1, 1], [], []>} : vector<8x64xf32>, vector<64x256xf32>, vector<8x256xf32> -> vector<8x256xf32>
    %148 = arith.addf %146, %147 : vector<8x256xf32>
    %149 = arith.negf %148 : vector<8x256xf32>
    %150 = math.exp %149 : vector<8x256xf32>
    %cst_28 = arith.constant 1.000000e+00 : f32
    %151 = vector.broadcast %cst_28 : f32 to vector<8x256xf32>
    %152 = arith.addf %151, %150 : vector<8x256xf32>
    %153 = arith.divf %151, %152 : vector<8x256xf32>
    %154 = arith.mulf %153, %26 : vector<8x256xf32>
    %155 = arith.addf %154, %29 : vector<8x256xf32>
    %156 = vector.extract_strided_slice %155 {offsets = [0, 0], sizes = [8, 64], strides = [1, 1]} : vector<8x256xf32> to vector<8x64xf32>
    %157 = vector.extract_strided_slice %155 {offsets = [0, 64], sizes = [8, 64], strides = [1, 1]} : vector<8x256xf32> to vector<8x64xf32>
    %158 = vector.extract_strided_slice %155 {offsets = [0, 128], sizes = [8, 64], strides = [1, 1]} : vector<8x256xf32> to vector<8x64xf32>
    %159 = vector.extract_strided_slice %155 {offsets = [0, 192], sizes = [8, 64], strides = [1, 1]} : vector<8x256xf32> to vector<8x64xf32>
    %160 = arith.mulf %157, %143 : vector<8x64xf32>
    %161 = arith.mulf %156, %158 : vector<8x64xf32>
    %162 = arith.addf %160, %161 : vector<8x64xf32>
    %163 = math.tanh %162 : vector<8x64xf32>
    %164 = arith.mulf %159, %163 : vector<8x64xf32>
    %165 = vector.extract_strided_slice %16 {offsets = [56, 0], sizes = [8, 256], strides = [1, 1]} : vector<64x256xf32> to vector<8x256xf32>
    %cst_29 = arith.constant dense<0.000000e+00> : vector<8x256xf32>
    %166 = tpu.matmul %164, %17, %cst_29 {dimension_numbers = #tpu.dot_dimension_numbers<[1], [0], [0], [1], [0, 0, 1, 1], [], []>} : vector<8x64xf32>, vector<64x256xf32>, vector<8x256xf32> -> vector<8x256xf32>
    %167 = arith.addf %165, %166 : vector<8x256xf32>
    %168 = arith.negf %167 : vector<8x256xf32>
    %169 = math.exp %168 : vector<8x256xf32>
    %cst_30 = arith.constant 1.000000e+00 : f32
    %170 = vector.broadcast %cst_30 : f32 to vector<8x256xf32>
    %171 = arith.addf %170, %169 : vector<8x256xf32>
    %172 = arith.divf %170, %171 : vector<8x256xf32>
    %173 = arith.mulf %172, %26 : vector<8x256xf32>
    %174 = arith.addf %173, %29 : vector<8x256xf32>
    %175 = vector.extract_strided_slice %174 {offsets = [0, 0], sizes = [8, 64], strides = [1, 1]} : vector<8x256xf32> to vector<8x64xf32>
    %176 = vector.extract_strided_slice %174 {offsets = [0, 64], sizes = [8, 64], strides = [1, 1]} : vector<8x256xf32> to vector<8x64xf32>
    %177 = vector.extract_strided_slice %174 {offsets = [0, 128], sizes = [8, 64], strides = [1, 1]} : vector<8x256xf32> to vector<8x64xf32>
    %178 = vector.extract_strided_slice %174 {offsets = [0, 192], sizes = [8, 64], strides = [1, 1]} : vector<8x256xf32> to vector<8x64xf32>
    %179 = arith.mulf %176, %162 : vector<8x64xf32>
    %180 = arith.mulf %175, %177 : vector<8x64xf32>
    %181 = arith.addf %179, %180 : vector<8x64xf32>
    %182 = math.tanh %181 : vector<8x64xf32>
    %183 = arith.mulf %178, %182 : vector<8x64xf32>
    %c0_31 = arith.constant 0 : index
    %c0_32 = arith.constant 0 : index
    %184 = vector.load %arg5[%c0_31, %c0_32] : memref<64x128xf32, #tpu.memory_space<vmem>>, vector<64x128xf32>
    %cst_33 = arith.constant dense<0.000000e+00> : vector<8x128xf32>
    %185 = tpu.matmul %183, %184, %cst_33 {dimension_numbers = #tpu.dot_dimension_numbers<[1], [0], [0], [1], [0, 0, 1, 1], [], []>} : vector<8x64xf32>, vector<64x128xf32>, vector<8x128xf32> -> vector<8x128xf32>
    %c0_34 = arith.constant 0 : index
    %c0_35 = arith.constant 0 : index
    %186 = vector.load %arg6[%c0_34, %c0_35] : memref<1x128xf32, #tpu.memory_space<vmem>>, vector<1x128xf32>
    %187 = vector.broadcast %186 : vector<1x128xf32> to vector<8x128xf32>
    %188 = arith.addf %185, %187 : vector<8x128xf32>
    %189 = arith.negf %188 : vector<8x128xf32>
    %190 = math.exp %189 : vector<8x128xf32>
    %cst_36 = arith.constant 1.000000e+00 : f32
    %191 = vector.broadcast %cst_36 : f32 to vector<8x128xf32>
    %192 = arith.addf %191, %190 : vector<8x128xf32>
    %193 = arith.divf %191, %192 : vector<8x128xf32>
    %c0_37 = arith.constant 0 : index
    %c0_38 = arith.constant 0 : index
    %194 = vector.load %arg7[%c0_37, %c0_38] : memref<8x128xf32, #tpu.memory_space<vmem>>, vector<8x128xf32>
    tpu.vector_store %arg7[%c0_37, %c0_38], %193 {strides = array<i32>} : memref<8x128xf32, #tpu.memory_space<vmem>>, vector<8x128xf32>,
    return
  }
}

</mosaic_0001>

<llo_original>
// kernel: quest_forward.1
$region0: #{quest_forward.1}
  #allocation0 [shape = 'u32[]', space=smem, size = 0x4, offset = 0x4, fixed_abs, tag = 'smem constant byte address 0x4 - core index']
  #allocation1 [shape = 'u32[144,128]{1,0:T(1,128)}', space=vmem, size = 0x12000, scoped, tag = 'internal scratch']
  %s0 = inlined_call_operand.vmem [shape: s32[64,1], index: 0, kind: input, shape index: {}]
  %s1 = inlined_call_operand.vmem [shape: s32[64,1], index: 1, kind: input, shape index: {}]
  %s2 = inlined_call_operand.vmem [shape: f32[100,256], index: 2, kind: input, shape index: {}]
  %s3 = inlined_call_operand.hbm [shape: f32[64,256], index: 3, kind: input, shape index: {}]
  %s4 = inlined_call_operand.vmem [shape: f32[1,256], index: 4, kind: input, shape index: {}]
  %s5 = inlined_call_operand.hbm [shape: f32[64,128], index: 5, kind: input, shape index: {}]
  %s6 = inlined_call_operand.vmem [shape: f32[1,128], index: 6, kind: input, shape index: {}]
  %s7 = inlined_call_operand.vmem [shape: f32[8,128], index: 7, kind: output, shape index: {}]
  %s8 = sld [smem:[#allocation0]]
  $region46: #{quest_forward.1} parent=0
    _
  %s10 = ssub.s32 1, %s8
  %s11 = scalar_select 0, %s10, %s8
  $region1: #{quest_forward.1} parent=0
    #allocation2 [shape = 'u8[65536]{0}', space=vmem, size = 0x10000, scoped, tag = 'input window, operand 3, single buffered']
    #allocation3 [shape = 's32[1]{0}', space=sflag, size = 0x4, scoped, tag = 'scoped memory for quest_forward.1']
    #allocation4 [shape = 'u8[32768]{0}', space=vmem, size = 0x8000, scoped, tag = 'input window, operand 5, single buffered']
    #allocation5 [shape = 's32[1]{0}', space=sflag, size = 0x4, scoped, tag = 'scoped memory for quest_forward.1']
    %12 = vsyncpa [#allocation3], 0
    %13 = vsyncpa [#allocation5], 0
    // Predicated region
    $region2: #{quest_forward.1} parent=1 // pred_check
      _
    $region3: #{quest_forward.1} parent=1 // pred_check_branch
      %15 = sbr.rel (0) target = $region5
    $region4: #{quest_forward.1} parent=1 // pred_region
      _
    $region5: #{quest_forward.1} parent=1 // pred_fallthru
      _
    // Predicated region
    $region6: #{quest_forward.1} parent=1 // pred_check
      _
    $region7: #{quest_forward.1} parent=1 // pred_check_branch
      %17 = sbr.rel (0) target = $region9
    $region8: #{quest_forward.1} parent=1 // pred_region
      _
    $region9: #{quest_forward.1} parent=1 // pred_fallthru
      _
    // Predicated region
    $region10: #{quest_forward.1} parent=1 // pred_check
      _
    $region11: #{quest_forward.1} parent=1 // pred_check_branch
      %19 = sbr.rel (0) target = $region13
    $region12: #{quest_forward.1} parent=1 // pred_region
      _
    $region13: #{quest_forward.1} parent=1 // pred_fallthru
      _
    // Predicated region
    $region14: #{quest_forward.1} parent=1 // pred_check
      _
    $region15: #{quest_forward.1} parent=1 // pred_check_branch
      %21 = sbr.rel (0) target = $region17
    $region16: #{quest_forward.1} parent=1 // pred_region
      %s23 = ssub.s32 2048, 2048
      %24 = vsyncadd [#allocation3], %s23
      %s25 = sshll.u32 [#allocation2], 4
      %s26 = int_to_ptr.vmem [resolvable:$true] %s25
      %31 = dma.hbm_to_vmem [thread:$0]  %s3, 2048, %s26, [#allocation3], 256, 256, 16
    $region17: #{quest_forward.1} parent=1 // pred_fallthru
      _
    // Predicated region
    $region18: #{quest_forward.1} parent=1 // pred_check
      _
    $region19: #{quest_forward.1} parent=1 // pred_check_branch
      %33 = sbr.rel (0) target = $region21
    $region20: #{quest_forward.1} parent=1 // pred_region
      _
    $region21: #{quest_forward.1} parent=1 // pred_fallthru
      _
    // Predicated region
    $region22: #{quest_forward.1} parent=1 // pred_check
      _
    $region23: #{quest_forward.1} parent=1 // pred_check_branch
      %35 = sbr.rel (0) target = $region25
    $region24: #{quest_forward.1} parent=1 // pred_region
      %s37 = ssub.s32 1024, 1024
      %38 = vsyncadd [#allocation5], %s37
      %s39 = sshll.u32 [#allocation4], 4
      %s40 = int_to_ptr.vmem [resolvable:$true] %s39
      %45 = dma.hbm_to_vmem [thread:$0]  %s5, 1024, %s40, [#allocation5], 128, 128, 8
    $region25: #{quest_forward.1} parent=1 // pred_fallthru
      _
    // Predicated region
    $region26: #{quest_forward.1} parent=1 // pred_check
      _
    $region27: #{quest_forward.1} parent=1 // pred_check_branch
      %47 = sbr.rel (0) target = $region29
    $region28: #{quest_forward.1} parent=1 // pred_region
      _
    $region29: #{quest_forward.1} parent=1 // pred_fallthru
      _
    // Predicated region
    $region30: #{quest_forward.1} parent=1 // pred_check
      _
    $region31: #{quest_forward.1} parent=1 // pred_check_branch
      %49 = sbr.rel (0) target = $region33
    $region32: #{quest_forward.1} parent=1 // pred_region
      %50 = dma.done [#allocation3], 2048
    $region33: #{quest_forward.1} parent=1 // pred_fallthru
      _
    // Predicated region
    $region34: #{quest_forward.1} parent=1 // pred_check
      _
    $region35: #{quest_forward.1} parent=1 // pred_check_branch
      %52 = sbr.rel (0) target = $region37
    $region36: #{quest_forward.1} parent=1 // pred_region
      %53 = dma.done [#allocation5], 1024
    $region37: #{quest_forward.1} parent=1 // pred_fallthru
      _
    %v54 = vlaneseq
    %v55 = vand.u32 %v54, 127
    %v56 = vld [vmem:[%s0] sm:$0xff]
    %v57 = vld [vmem:[%s0 + $0x8] sm:$0xff]
    %v58 = vld [vmem:[%s0 + $0x10] sm:$0xff]
    %v59 = vld [vmem:[%s0 + $0x18] sm:$0xff]
    %v60 = vld [vmem:[%s0 + $0x20] sm:$0xff]
    %v61 = vld [vmem:[%s0 + $0x28] sm:$0xff]
    %v62 = vld [vmem:[%s0 + $0x30] sm:$0xff]
    %v63 = vld [vmem:[%s0 + $0x38] sm:$0xff]
    %64 = vset.pattern.permute.xlu0 0
    %65 = vperm.xlu0 %64, %v56
    %v66 = vpop.permute.xlu0 %65
    %67 = vset.pattern.permute.xlu0 0
    %68 = vperm.xlu0 %67, %v57
    %v69 = vpop.permute.xlu0 %68
    %70 = vset.pattern.permute.xlu0 0
    %71 = vperm.xlu0 %70, %v58
    %v72 = vpop.permute.xlu0 %71
    %73 = vset.pattern.permute.xlu0 0
    %74 = vperm.xlu0 %73, %v59
    %v75 = vpop.permute.xlu0 %74
    %76 = vset.pattern.permute.xlu0 0
    %77 = vperm.xlu0 %76, %v60
    %v78 = vpop.permute.xlu0 %77
    %79 = vset.pattern.permute.xlu0 0
    %80 = vperm.xlu0 %79, %v61
    %v81 = vpop.permute.xlu0 %80
    %82 = vset.pattern.permute.xlu0 0
    %83 = vperm.xlu0 %82, %v62
    %v84 = vpop.permute.xlu0 %83
    %85 = vset.pattern.permute.xlu0 0
    %86 = vperm.xlu0 %85, %v63
    %v87 = vpop.permute.xlu0 %86
    %vm88 = vcmp.eq.s32.totalorder %v66, %v55
    %vm89 = vcmp.eq.s32.totalorder %v69, %v55
    %vm90 = vcmp.eq.s32.totalorder %v72, %v55
    %vm91 = vcmp.eq.s32.totalorder %v75, %v55
    %vm92 = vcmp.eq.s32.totalorder %v78, %v55
    %vm93 = vcmp.eq.s32.totalorder %v81, %v55
    %vm94 = vcmp.eq.s32.totalorder %v84, %v55
    %vm95 = vcmp.eq.s32.totalorder %v87, %v55
    %v96 = vsel %vm88, 1, 0
    %v97 = vsel %vm89, 1, 0
    %v98 = vsel %vm90, 1, 0
    %v99 = vsel %vm91, 1, 0
    %v100 = vsel %vm92, 1, 0
    %v101 = vsel %vm93, 1, 0
    %v102 = vsel %vm94, 1, 0
    %v103 = vsel %vm95, 1, 0
    %v104 = vcvt.s32.f32 %v96
    %v105 = vcvt.s32.f32 %v97
    %v106 = vcvt.s32.f32 %v98
    %v107 = vcvt.s32.f32 %v99
    %v108 = vcvt.s32.f32 %v100
    %v109 = vcvt.s32.f32 %v101
    %v110 = vcvt.s32.f32 %v102
    %v111 = vcvt.s32.f32 %v103
    %v112 = vld [vmem:[%s1] sm:$0xff]
    %v113 = vld [vmem:[%s1 + $0x8] sm:$0xff]
    %v114 = vld [vmem:[%s1 + $0x10] sm:$0xff]
    %v115 = vld [vmem:[%s1 + $0x18] sm:$0xff]
    %v116 = vld [vmem:[%s1 + $0x20] sm:$0xff]
    %v117 = vld [vmem:[%s1 + $0x28] sm:$0xff]
    %v118 = vld [vmem:[%s1 + $0x30] sm:$0xff]
    %v119 = vld [vmem:[%s1 + $0x38] sm:$0xff]
    %120 = vset.pattern.permute.xlu0 0
    %121 = vperm.xlu0 %120, %v112
    %v122 = vpop.permute.xlu0 %121
    %123 = vset.pattern.permute.xlu0 0
    %124 = vperm.xlu0 %123, %v113
    %v125 = vpop.permute.xlu0 %124
    %126 = vset.pattern.permute.xlu0 0
    %127 = vperm.xlu0 %126, %v114
    %v128 = vpop.permute.xlu0 %127
    %129 = vset.pattern.permute.xlu0 0
    %130 = vperm.xlu0 %129, %v115
    %v131 = vpop.permute.xlu0 %130
    %132 = vset.pattern.permute.xlu0 0
    %133 = vperm.xlu0 %132, %v116
    %v134 = vpop.permute.xlu0 %133
    %135 = vset.pattern.permute.xlu0 0
    %136 = vperm.xlu0 %135, %v117
    %v137 = vpop.permute.xlu0 %136
    %138 = vset.pattern.permute.xlu0 0
    %139 = vperm.xlu0 %138, %v118
    %v140 = vpop.permute.xlu0 %139
    %141 = vset.pattern.permute.xlu0 0
    %142 = vperm.xlu0 %141, %v119
    %v143 = vpop.permute.xlu0 %142
    %vm144 = vcmp.eq.s32.totalorder %v122, %v55
    %vm145 = vcmp.eq.s32.totalorder %v125, %v55
    %vm146 = vcmp.eq.s32.totalorder %v128, %v55
    %vm147 = vcmp.eq.s32.totalorder %v131, %v55
    %vm148 = vcmp.eq.s32.totalorder %v134, %v55
    %vm149 = vcmp.eq.s32.totalorder %v137, %v55
    %vm150 = vcmp.eq.s32.totalorder %v140, %v55
    %vm151 = vcmp.eq.s32.totalorder %v143, %v55
    %v152 = vsel %vm144, 1, 0
    %v153 = vsel %vm145, 1, 0
    %v154 = vsel %vm146, 1, 0
    %v155 = vsel %vm147, 1, 0
    %v156 = vsel %vm148, 1, 0
    %v157 = vsel %vm149, 1, 0
    %v158 = vsel %vm150, 1, 0
    %v159 = vsel %vm151, 1, 0
    %v160 = vcvt.s32.f32 %v152
    %v161 = vcvt.s32.f32 %v153
    %v162 = vcvt.s32.f32 %v154
    %v163 = vcvt.s32.f32 %v155
    %v164 = vcvt.s32.f32 %v156
    %v165 = vcvt.s32.f32 %v157
    %v166 = vcvt.s32.f32 %v158
    %v167 = vcvt.s32.f32 %v159
    %v168 = vadd.f32 %v104, %v160
    %v169 = vadd.f32 %v105, %v161
    %v170 = vadd.f32 %v106, %v162
    %v171 = vadd.f32 %v107, %v163
    %v172 = vadd.f32 %v108, %v164
    %v173 = vadd.f32 %v109, %v165
    %v174 = vadd.f32 %v110, %v166
    %v175 = vadd.f32 %v111, %v167
    %v176 = vld [vmem:[%s2] sm:$0xff]
    %v177 = vld [vmem:[%s2 + $0x8] sm:$0xff]
    %v178 = vld [vmem:[%s2 + $0x10] sm:$0xff]
    %v179 = vld [vmem:[%s2 + $0x18] sm:$0xff]
    %v180 = vld [vmem:[%s2 + $0x20] sm:$0xff]
    %v181 = vld [vmem:[%s2 + $0x28] sm:$0xff]
    %v182 = vld [vmem:[%s2 + $0x30] sm:$0xff]
    %v183 = vld [vmem:[%s2 + $0x38] sm:$0xff]
    %v184 = vld [vmem:[%s2 + $0x40] sm:$0xff]
    %v185 = vld [vmem:[%s2 + $0x48] sm:$0xff]
    %v186 = vld [vmem:[%s2 + $0x50] sm:$0xff]
    %v187 = vld [vmem:[%s2 + $0x58] sm:$0xff]
    %v188 = vld [vmem:[%s2 + $0x60] sm:$0xff]
    %v189 = vld [vmem:[%s2 + $0x68] sm:$0xff]
    %v190 = vld [vmem:[%s2 + $0x70] sm:$0xff]
    %v191 = vld [vmem:[%s2 + $0x78] sm:$0xff]
    %v192 = vld [vmem:[%s2 + $0x80] sm:$0xff]
    %v193 = vld [vmem:[%s2 + $0x88] sm:$0xff]
    %v194 = vld [vmem:[%s2 + $0x90] sm:$0xff]
    %v195 = vld [vmem:[%s2 + $0x98] sm:$0xff]
    %v196 = vld [vmem:[%s2 + $0xa0] sm:$0xff]
    %v197 = vld [vmem:[%s2 + $0xa8] sm:$0xff]
    %v198 = vld [vmem:[%s2 + $0xb0] sm:$0xff]
    %v199 = vld [vmem:[%s2 + $0xb8] sm:$0xff]
    %v200 = vld [vmem:[%s2 + $0xc0] sm:$0xf]
    %v201 = vld [vmem:[%s2 + $0xc8] sm:$0xf]
    %v202 = vld [vmem:[%s4] sm:$0x3]
    %v204 = vlaneseq
    %v205 = vshrl.u32 %v204, 7
    %v206 = vsub.s32 0, %v205
    %v207 = vrot.slane %v202, %v206
    %v208 = vlaneseq
    %v209 = vshrl.u32 %v208, 7
    %v210 = vsub.s32 1, %v209
    %v211 = vrot.slane %v202, %v210
    %vm214 = vcmask 818176
    %v216 = vsel %vm214, %v168, 0
    %v219 = vsel %vm214, %v169, 0
    %v222 = vsel %vm214, %v170, 0
    %v225 = vsel %vm214, %v171, 0
    %v228 = vsel %vm214, %v172, 0
    %v231 = vsel %vm214, %v173, 0
    %v234 = vsel %vm214, %v174, 0
    %v237 = vsel %vm214, %v175, 0
    %vm239 = vcmask 1043456
    %v241 = vsel %vm239, %v200, 0
    %v244 = vsel %vm239, %v201, 0
    %246 = vmatprep.subr.mxu0 %v177
    %247 = vmatpush1.msra.mxu0 %v176
    %248 = vmatprep.subr.mxu0 %v179
    %249 = vmatpush1.msra.mxu0 %v178
    %250 = vmatprep.subr.mxu0 %v181
    %251 = vmatpush1.msra.mxu0 %v180
    %252 = vmatprep.subr.mxu0 %v183
    %253 = vmatpush1.msra.mxu0 %v182
    %254 = vmatprep.subr.mxu0 %v185
    %255 = vmatpush1.msra.mxu0 %v184
    %256 = vmatprep.subr.mxu0 %v187
    %257 = vmatpush1.msra.mxu0 %v186
    %258 = vmatprep.subr.mxu0 %v189
    %259 = vmatpush1.msra.mxu0 %v188
    %260 = vmatprep.subr.mxu0 %v191
    %261 = vmatpush1.msra.mxu0 %v190
    %262 = vmatprep.subr.mxu0 %v193
    %263 = vmatpush1.msra.mxu0 %v192
    %264 = vmatprep.subr.mxu0 %v195
    %265 = vmatpush1.msra.mxu0 %v194
    %266 = vmatprep.subr.mxu0 %v197
    %267 = vmatpush1.msra.mxu0 %v196
    %268 = vmatprep.subr.mxu0 %v199
    %269 = vmatpush1.msra.mxu0 %v198
    %270 = vmatprep.subr.mxu0 %v244
    %271 = vmatpush1.msra.mxu0 %v241
    %272 = vmatprep.subr.mxu0 0.0
    %273 = vmatpush1.msra.mxu0 0.0
    %274 = vmatprep.subr.mxu0 0.0
    %275 = vmatpush1.msra.mxu0 0.0
    %276 = vmatprep.subr.mxu0 0.0
    %277 = vmatpush1.msra.mxu0 0.0
    %278 = vmatprep.subr.mxu0 0.0
    %279 = vmatpush1.msra.mxu0 0.0
    %280 = vmatprep.subr.mxu0 0.0
    %281 = vmatpush1.msra.mxu0 0.0
    %282 = vmatprep.subr.mxu0 0.0
    %283 = vmatpush1.msra.mxu0 0.0
    %284 = vmatprep.subr.mxu0 0.0
    %285 = vmatpush1.msra.mxu0 0.0
    %286 = vmatprep.subr.mxu0 0.0
    %287 = vmatpush1.msra.mxu0 0.0
    %288 = vmatprep.subr.mxu0 0.0
    %289 = vmatpush1.msra.mxu0 0.0
    %290 = vmatprep.subr.mxu0 0.0
    %291 = vmatpush1.msra.mxu0 0.0
    %292 = vmatprep.subr.mxu0 0.0
    %293 = vmatpush1.msra.mxu0 0.0
    %294 = vmatprep.subr.mxu0 0.0
    %295 = vmatpush1.msra.mxu0 0.0
    %296 = vmatprep.subr.mxu0 0.0
    %297 = vmatpush1.msra.mxu0 0.0
    %298 = vmatprep.subr.mxu0 0.0
    %299 = vmatpush1.msra.mxu0 0.0
    %300 = vmatprep.subr.mxu0 0.0
    %301 = vmatpush1.msra.mxu0 0.0
    %302 = vmatprep.subr.mxu0 0.0
    %303 = vmatpush1.msra.mxu0 0.0
    %304 = vmatprep.subr.mxu0 0.0
    %305 = vmatpush1.msra.mxu0 0.0
    %306 = vmatprep.subr.mxu0 0.0
    %307 = vmatpush1.msra.mxu0 0.0
    %308 = vmatprep.subr.mxu0 0.0
    %309 = vmatpush1.msra.mxu0 0.0
    %310 = vmatprep.mubr.f32.mxu0 0.0
    %311 = vmatmul.mubr.f32.gmra.mrb[0].mxu0 %v216
    %v312 = vpop.f32.mrb[0].mxu0
    %v313 = vadd.f32 %v207, %v312
    %v314 = vpop.f32.mrb[0].mxu0
    %v315 = vadd.f32 %v211, %v314
    %316 = vmatprep.mubr.f32.mxu0 0.0
    %317 = vmatmul.mubr.f32.gmra.mrb[0].mxu0 %v219
    %v318 = vpop.f32.mrb[0].mxu0
    %v319 = vadd.f32 %v207, %v318
    %v320 = vpop.f32.mrb[0].mxu0
    %v321 = vadd.f32 %v211, %v320
    %322 = vmatprep.mubr.f32.mxu0 0.0
    %323 = vmatmul.mubr.f32.gmra.mrb[0].mxu0 %v222
    %v324 = vpop.f32.mrb[0].mxu0
    %v325 = vadd.f32 %v207, %v324
    %v326 = vpop.f32.mrb[0].mxu0
    %v327 = vadd.f32 %v211, %v326
    %328 = vmatprep.mubr.f32.mxu0 0.0
    %329 = vmatmul.mubr.f32.gmra.mrb[0].mxu0 %v225
    %v330 = vpop.f32.mrb[0].mxu0
    %v331 = vadd.f32 %v207, %v330
    %v332 = vpop.f32.mrb[0].mxu0
    %v333 = vadd.f32 %v211, %v332
    %334 = vmatprep.mubr.f32.mxu0 0.0
    %335 = vmatmul.mubr.f32.gmra.mrb[0].mxu0 %v228
    %v336 = vpop.f32.mrb[0].mxu0
    %v337 = vadd.f32 %v207, %v336
    %v338 = vpop.f32.mrb[0].mxu0
    %v339 = vadd.f32 %v211, %v338
    %340 = vmatprep.mubr.f32.mxu0 0.0
    %341 = vmatmul.mubr.f32.gmra.mrb[0].mxu0 %v231
    %v342 = vpop.f32.mrb[0].mxu0
    %v343 = vadd.f32 %v207, %v342
    %v344 = vpop.f32.mrb[0].mxu0
    %v345 = vadd.f32 %v211, %v344
    %346 = vmatprep.mubr.f32.mxu0 0.0
    %347 = vmatmul.mubr.f32.gmra.mrb[0].mxu0 %v234
    %v348 = vpop.f32.mrb[0].mxu0
    %v349 = vadd.f32 %v207, %v348
    %v350 = vpop.f32.mrb[0].mxu0
    %v351 = vadd.f32 %v211, %v350
    %352 = vmatprep.mubr.f32.mxu0 0.0
    %353 = vmatmul.mubr.f32.gmra.mrb[0].mxu0 %v237
    %v354 = vpop.f32.mrb[0].mxu0
    %v355 = vadd.f32 %v207, %v354
    %v356 = vpop.f32.mrb[0].mxu0
    %v357 = vadd.f32 %v211, %v356
    %358 = vdwg.mxu0
    %v359 = vld [vmem:[#allocation2] sm:$0xff]
    %v360 = vld [vmem:[#allocation2 + $0x8] sm:$0xff]
    %v361 = vld [vmem:[#allocation2 + $0x10] sm:$0xff]
    %v362 = vld [vmem:[#allocation2 + $0x18] sm:$0xff]
    %v363 = vld [vmem:[#allocation2 + $0x20] sm:$0xff]
    %v364 = vld [vmem:[#allocation2 + $0x28] sm:$0xff]
    %v365 = vld [vmem:[#allocation2 + $0x30] sm:$0xff]
    %v366 = vld [vmem:[#allocation2 + $0x38] sm:$0xff]
    %v367 = vld [vmem:[#allocation2 + $0x40] sm:$0xff]
    %v368 = vld [vmem:[#allocation2 + $0x48] sm:$0xff]
    %v369 = vld [vmem:[#allocation2 + $0x50] sm:$0xff]
    %v370 = vld [vmem:[#allocation2 + $0x58] sm:$0xff]
    %v371 = vld [vmem:[#allocation2 + $0x60] sm:$0xff]
    %v372 = vld [vmem:[#allocation2 + $0x68] sm:$0xff]
    %v373 = vld [vmem:[#allocation2 + $0x70] sm:$0xff]
    %v374 = vld [vmem:[#allocation2 + $0x78] sm:$0xff]
    %v375 = vadd.s32 %v55, 128
    %vm376 = vcmp.ge.s32.totalorder %v55, 128
    %vm377 = vcmp.ge.s32.totalorder %v375, 128
    %vm378 = vcmp.lt.s32.totalorder %v55, 192
    %vm379 = vcmp.lt.s32.totalorder %v375, 192
    %vm380 = vmand %vm376, %vm378
    %vm381 = vmand %vm377, %vm379
    %v382 = vsel %vm380, 2.0, 1.0
    %v383 = vsel %vm381, 2.0, 1.0
    %v384 = vsel %vm380, -1.0, 0.0
    %v385 = vsel %vm381, -1.0, 0.0
    %vm386 = vcmask 523264
    %v388 = vsel %vm386, 0.0, 0
    %390 = vmatprep.subr.mxu0 %v360
    %391 = vmatpush1.msra.mxu0 %v359
    %392 = vmatprep.subr.mxu0 %v362
    %393 = vmatpush1.msra.mxu0 %v361
    %394 = vmatprep.subr.mxu0 %v364
    %395 = vmatpush1.msra.mxu0 %v363
    %396 = vmatprep.subr.mxu0 %v366
    %397 = vmatpush1.msra.mxu0 %v365
    %398 = vmatprep.subr.mxu0 %v368
    %399 = vmatpush1.msra.mxu0 %v367
    %400 = vmatprep.subr.mxu0 %v370
    %401 = vmatpush1.msra.mxu0 %v369
    %402 = vmatprep.subr.mxu0 %v372
    %403 = vmatpush1.msra.mxu0 %v371
    %404 = vmatprep.subr.mxu0 %v374
    %405 = vmatpush1.msra.mxu0 %v373
    %406 = vmatprep.subr.mxu0 0.0
    %407 = vmatpush1.msra.mxu0 0.0
    %408 = vmatprep.subr.mxu0 0.0
    %409 = vmatpush1.msra.mxu0 0.0
    %410 = vmatprep.subr.mxu0 0.0
    %411 = vmatpush1.msra.mxu0 0.0
    %412 = vmatprep.subr.mxu0 0.0
    %413 = vmatpush1.msra.mxu0 0.0
    %414 = vmatprep.subr.mxu0 0.0
    %415 = vmatpush1.msra.mxu0 0.0
    %416 = vmatprep.subr.mxu0 0.0
    %417 = vmatpush1.msra.mxu0 0.0
    %418 = vmatprep.subr.mxu0 0.0
    %419 = vmatpush1.msra.mxu0 0.0
    %420 = vmatprep.subr.mxu0 0.0
    %421 = vmatpush1.msra.mxu0 0.0
    %422 = vmatprep.subr.mxu0 0.0
    %423 = vmatpush1.msra.mxu0 0.0
    %424 = vmatprep.subr.mxu0 0.0
    %425 = vmatpush1.msra.mxu0 0.0
    %426 = vmatprep.subr.mxu0 0.0
    %427 = vmatpush1.msra.mxu0 0.0
    %428 = vmatprep.subr.mxu0 0.0
    %429 = vmatpush1.msra.mxu0 0.0
    %430 = vmatprep.subr.mxu0 0.0
    %431 = vmatpush1.msra.mxu0 0.0
    %432 = vmatprep.subr.mxu0 0.0
    %433 = vmatpush1.msra.mxu0 0.0
    %434 = vmatprep.subr.mxu0 0.0
    %435 = vmatpush1.msra.mxu0 0.0
    %436 = vmatprep.subr.mxu0 0.0
    %437 = vmatpush1.msra.mxu0 0.0
    %438 = vmatprep.subr.mxu0 0.0
    %439 = vmatpush1.msra.mxu0 0.0
    %440 = vmatprep.subr.mxu0 0.0
    %441 = vmatpush1.msra.mxu0 0.0
    %442 = vmatprep.subr.mxu0 0.0
    %443 = vmatpush1.msra.mxu0 0.0
    %444 = vmatprep.subr.mxu0 0.0
    %445 = vmatpush1.msra.mxu0 0.0
    %446 = vmatprep.subr.mxu0 0.0
    %447 = vmatpush1.msra.mxu0 0.0
    %448 = vmatprep.subr.mxu0 0.0
    %449 = vmatpush1.msra.mxu0 0.0
    %450 = vmatprep.subr.mxu0 0.0
    %451 = vmatpush1.msra.mxu0 0.0
    %452 = vmatprep.subr.mxu0 0.0
    %453 = vmatpush1.msra.mxu0 0.0
    %454 = vmatprep.mubr.f32.mxu0 0.0
    %455 = vmatmul.mubr.f32.gmra.mrb[0].mxu0 %v388
    %v456 = vpop.f32.mrb[0].mxu0
    %v457 = vadd.f32 0.0, %v456
    %v458 = vpop.f32.mrb[0].mxu0
    %v459 = vadd.f32 0.0, %v458
    %460 = vdwg.mxu0
    %v461 = vadd.f32 %v313, %v457
    %v462 = vadd.f32 %v315, %v459
    %v463 = vxor.u32 %v461, 2147483648
    %v464 = vxor.u32 %v462, 2147483648
    %v465 = vmul.f32 %v463, 1.442695
    %v466 = vpow.pop %v465
    %v467 = vmul.f32 %v464, 1.442695
    %v468 = vpow.pop %v467
    %v469 = vadd.f32 %v466, 1.0
    %v470 = vadd.f32 %v468, 1.0
    %v471 = vrcp.pop %v469
    %v472 = vmul.f32 1.0, %v471
    %v473 = vrcp.pop %v470
    %v474 = vmul.f32 1.0, %v473
    %v475 = vmul.f32 %v472, %v382
    %v476 = vmul.f32 %v474, %v383
    %v477 = vadd.f32 %v475, %v384
    %v478 = vadd.f32 %v476, %v385
    %v479 = vmul.f32 %v477, 0.0
    %v480 = vmul.f32 %v477, %v478
    %482 = vrot.lane.b32.xlu0 %v480, 64
    %v483 = vpop.permute.xlu0 %482
    %v485 = vadd.f32 %v479, %v483
    %v486 = vtanh.pop %v485
    %v487 = vmul.f32 %v478, %v486
    %489 = vrot.lane.b32.xlu0 %v487, 64
    %v490 = vpop.permute.xlu0 %489
    %v491 = vsel %vm386, %v490, 0
    %493 = vmatprep.subr.mxu0 %v360
    %494 = vmatpush1.msra.mxu0 %v359
    %495 = vmatprep.subr.mxu0 %v362
    %496 = vmatpush1.msra.mxu0 %v361
    %497 = vmatprep.subr.mxu0 %v364
    %498 = vmatpush1.msra.mxu0 %v363
    %499 = vmatprep.subr.mxu0 %v366
    %500 = vmatpush1.msra.mxu0 %v365
    %501 = vmatprep.subr.mxu0 %v368
    %502 = vmatpush1.msra.mxu0 %v367
    %503 = vmatprep.subr.mxu0 %v370
    %504 = vmatpush1.msra.mxu0 %v369
    %505 = vmatprep.subr.mxu0 %v372
    %506 = vmatpush1.msra.mxu0 %v371
    %507 = vmatprep.subr.mxu0 %v374
    %508 = vmatpush1.msra.mxu0 %v373
    %509 = vmatprep.subr.mxu0 0.0
    %510 = vmatpush1.msra.mxu0 0.0
    %511 = vmatprep.subr.mxu0 0.0
    %512 = vmatpush1.msra.mxu0 0.0
    %513 = vmatprep.subr.mxu0 0.0
    %514 = vmatpush1.msra.mxu0 0.0
    %515 = vmatprep.subr.mxu0 0.0
    %516 = vmatpush1.msra.mxu0 0.0
    %517 = vmatprep.subr.mxu0 0.0
    %518 = vmatpush1.msra.mxu0 0.0
    %519 = vmatprep.subr.mxu0 0.0
    %520 = vmatpush1.msra.mxu0 0.0
    %521 = vmatprep.subr.mxu0 0.0
    %522 = vmatpush1.msra.mxu0 0.0
    %523 = vmatprep.subr.mxu0 0.0
    %524 = vmatpush1.msra.mxu0 0.0
    %525 = vmatprep.subr.mxu0 0.0
    %526 = vmatpush1.msra.mxu0 0.0
    %527 = vmatprep.subr.mxu0 0.0
    %528 = vmatpush1.msra.mxu0 0.0
    %529 = vmatprep.subr.mxu0 0.0
    %530 = vmatpush1.msra.mxu0 0.0
    %531 = vmatprep.subr.mxu0 0.0
    %532 = vmatpush1.msra.mxu0 0.0
    %533 = vmatprep.subr.mxu0 0.0
    %534 = vmatpush1.msra.mxu0 0.0
    %535 = vmatprep.subr.mxu0 0.0
    %536 = vmatpush1.msra.mxu0 0.0
    %537 = vmatprep.subr.mxu0 0.0
    %538 = vmatpush1.msra.mxu0 0.0
    %539 = vmatprep.subr.mxu0 0.0
    %540 = vmatpush1.msra.mxu0 0.0
    %541 = vmatprep.subr.mxu0 0.0
    %542 = vmatpush1.msra.mxu0 0.0
    %543 = vmatprep.subr.mxu0 0.0
    %544 = vmatpush1.msra.mxu0 0.0
    %545 = vmatprep.subr.mxu0 0.0
    %546 = vmatpush1.msra.mxu0 0.0
    %547 = vmatprep.subr.mxu0 0.0
    %548 = vmatpush1.msra.mxu0 0.0
    %549 = vmatprep.subr.mxu0 0.0
    %550 = vmatpush1.msra.mxu0 0.0
    %551 = vmatprep.subr.mxu0 0.0
    %552 = vmatpush1.msra.mxu0 0.0
    %553 = vmatprep.subr.mxu0 0.0
    %554 = vmatpush1.msra.mxu0 0.0
    %555 = vmatprep.subr.mxu0 0.0
    %556 = vmatpush1.msra.mxu0 0.0
    %557 = vmatprep.mubr.f32.mxu0 0.0
    %558 = vmatmul.mubr.f32.gmra.mrb[0].mxu0 %v491
    %v559 = vpop.f32.mrb[0].mxu0
    %v560 = vadd.f32 0.0, %v559
    %v561 = vpop.f32.mrb[0].mxu0
    %v562 = vadd.f32 0.0, %v561
    %563 = vdwg.mxu0
    %v564 = vadd.f32 %v319, %v560
    %v565 = vadd.f32 %v321, %v562
    %v566 = vxor.u32 %v564, 2147483648
    %v567 = vxor.u32 %v565, 2147483648
    %v568 = vmul.f32 %v566, 1.442695
    %v569 = vpow.pop %v568
    %v570 = vmul.f32 %v567, 1.442695
    %v571 = vpow.pop %v570
    %v572 = vadd.f32 %v569, 1.0
    %v573 = vadd.f32 %v571, 1.0
    %v574 = vrcp.pop %v572
    %v575 = vmul.f32 1.0, %v574
    %v576 = vrcp.pop %v573
    %v577 = vmul.f32 1.0, %v576
    %v578 = vmul.f32 %v575, %v382
    %v579 = vmul.f32 %v577, %v383
    %v580 = vadd.f32 %v578, %v384
    %v581 = vadd.f32 %v579, %v385
    %v582 = vmul.f32 %v580, %v485
    %v583 = vmul.f32 %v580, %v581
    %585 = vrot.lane.b32.xlu0 %v583, 64
    %v586 = vpop.permute.xlu0 %585
    %v588 = vadd.f32 %v582, %v586
    %v589 = vtanh.pop %v588
    %v590 = vmul.f32 %v581, %v589
    %592 = vrot.lane.b32.xlu0 %v590, 64
    %v593 = vpop.permute.xlu0 %592
    %v594 = vsel %vm386, %v593, 0
    %596 = vmatprep.subr.mxu0 %v360
    %597 = vmatpush1.msra.mxu0 %v359
    %598 = vmatprep.subr.mxu0 %v362
    %599 = vmatpush1.msra.mxu0 %v361
    %600 = vmatprep.subr.mxu0 %v364
    %601 = vmatpush1.msra.mxu0 %v363
    %602 = vmatprep.subr.mxu0 %v366
    %603 = vmatpush1.msra.mxu0 %v365
    %604 = vmatprep.subr.mxu0 %v368
    %605 = vmatpush1.msra.mxu0 %v367
    %606 = vmatprep.subr.mxu0 %v370
    %607 = vmatpush1.msra.mxu0 %v369
    %608 = vmatprep.subr.mxu0 %v372
    %609 = vmatpush1.msra.mxu0 %v371
    %610 = vmatprep.subr.mxu0 %v374
    %611 = vmatpush1.msra.mxu0 %v373
    %612 = vmatprep.subr.mxu0 0.0
    %613 = vmatpush1.msra.mxu0 0.0
    %614 = vmatprep.subr.mxu0 0.0
    %615 = vmatpush1.msra.mxu0 0.0
    %616 = vmatprep.subr.mxu0 0.0
    %617 = vmatpush1.msra.mxu0 0.0
    %618 = vmatprep.subr.mxu0 0.0
    %619 = vmatpush1.msra.mxu0 0.0
    %620 = vmatprep.subr.mxu0 0.0
    %621 = vmatpush1.msra.mxu0 0.0
    %622 = vmatprep.subr.mxu0 0.0
    %623 = vmatpush1.msra.mxu0 0.0
    %624 = vmatprep.subr.mxu0 0.0
    %625 = vmatpush1.msra.mxu0 0.0
    %626 = vmatprep.subr.mxu0 0.0
    %627 = vmatpush1.msra.mxu0 0.0
    %628 = vmatprep.subr.mxu0 0.0
    %629 = vmatpush1.msra.mxu0 0.0
    %630 = vmatprep.subr.mxu0 0.0
    %631 = vmatpush1.msra.mxu0 0.0
    %632 = vmatprep.subr.mxu0 0.0
    %633 = vmatpush1.msra.mxu0 0.0
    %634 = vmatprep.subr.mxu0 0.0
    %635 = vmatpush1.msra.mxu0 0.0
    %636 = vmatprep.subr.mxu0 0.0
    %637 = vmatpush1.msra.mxu0 0.0
    %638 = vmatprep.subr.mxu0 0.0
    %639 = vmatpush1.msra.mxu0 0.0
    %640 = vmatprep.subr.mxu0 0.0
    %641 = vmatpush1.msra.mxu0 0.0
    %642 = vmatprep.subr.mxu0 0.0
    %643 = vmatpush1.msra.mxu0 0.0
    %644 = vmatprep.subr.mxu0 0.0
    %645 = vmatpush1.msra.mxu0 0.0
    %646 = vmatprep.subr.mxu0 0.0
    %647 = vmatpush1.msra.mxu0 0.0
    %648 = vmatprep.subr.mxu0 0.0
    %649 = vmatpush1.msra.mxu0 0.0
    %650 = vmatprep.subr.mxu0 0.0
    %651 = vmatpush1.msra.mxu0 0.0
    %652 = vmatprep.subr.mxu0 0.0
    %653 = vmatpush1.msra.mxu0 0.0
    %654 = vmatprep.subr.mxu0 0.0
    %655 = vmatpush1.msra.mxu0 0.0
    %656 = vmatprep.subr.mxu0 0.0
    %657 = vmatpush1.msra.mxu0 0.0
    %658 = vmatprep.subr.mxu0 0.0
    %659 = vmatpush1.msra.mxu0 0.0
    %660 = vmatprep.mubr.f32.mxu0 0.0
    %661 = vmatmul.mubr.f32.gmra.mrb[0].mxu0 %v594
    %v662 = vpop.f32.mrb[0].mxu0
    %v663 = vadd.f32 0.0, %v662
    %v664 = vpop.f32.mrb[0].mxu0
    %v665 = vadd.f32 0.0, %v664
    %666 = vdwg.mxu0
    %v667 = vadd.f32 %v325, %v663
    %v668 = vadd.f32 %v327, %v665
    %v669 = vxor.u32 %v667, 2147483648
    %v670 = vxor.u32 %v668, 2147483648
    %v671 = vmul.f32 %v669, 1.442695
    %v672 = vpow.pop %v671
    %v673 = vmul.f32 %v670, 1.442695
    %v674 = vpow.pop %v673
    %v675 = vadd.f32 %v672, 1.0
    %v676 = vadd.f32 %v674, 1.0
    %v677 = vrcp.pop %v675
    %v678 = vmul.f32 1.0, %v677
    %v679 = vrcp.pop %v676
    %v680 = vmul.f32 1.0, %v679
    %v681 = vmul.f32 %v678, %v382
    %v682 = vmul.f32 %v680, %v383
    %v683 = vadd.f32 %v681, %v384
    %v684 = vadd.f32 %v682, %v385
    %v685 = vmul.f32 %v683, %v588
    %v686 = vmul.f32 %v683, %v684
    %688 = vrot.lane.b32.xlu0 %v686, 64
    %v689 = vpop.permute.xlu0 %688
    %v691 = vadd.f32 %v685, %v689
    %v692 = vtanh.pop %v691
    %v693 = vmul.f32 %v684, %v692
    %695 = vrot.lane.b32.xlu0 %v693, 64
    %v696 = vpop.permute.xlu0 %695
    %v697 = vsel %vm386, %v696, 0
    %699 = vmatprep.subr.mxu0 %v360
    %700 = vmatpush1.msra.mxu0 %v359
    %701 = vmatprep.subr.mxu0 %v362
    %702 = vmatpush1.msra.mxu0 %v361
    %703 = vmatprep.subr.mxu0 %v364
    %704 = vmatpush1.msra.mxu0 %v363
    %705 = vmatprep.subr.mxu0 %v366
    %706 = vmatpush1.msra.mxu0 %v365
    %707 = vmatprep.subr.mxu0 %v368
    %708 = vmatpush1.msra.mxu0 %v367
    %709 = vmatprep.subr.mxu0 %v370
    %710 = vmatpush1.msra.mxu0 %v369
    %711 = vmatprep.subr.mxu0 %v372
    %712 = vmatpush1.msra.mxu0 %v371
    %713 = vmatprep.subr.mxu0 %v374
    %714 = vmatpush1.msra.mxu0 %v373
    %715 = vmatprep.subr.mxu0 0.0
    %716 = vmatpush1.msra.mxu0 0.0
    %717 = vmatprep.subr.mxu0 0.0
    %718 = vmatpush1.msra.mxu0 0.0
    %719 = vmatprep.subr.mxu0 0.0
    %720 = vmatpush1.msra.mxu0 0.0
    %721 = vmatprep.subr.mxu0 0.0
    %722 = vmatpush1.msra.mxu0 0.0
    %723 = vmatprep.subr.mxu0 0.0
    %724 = vmatpush1.msra.mxu0 0.0
    %725 = vmatprep.subr.mxu0 0.0
    %726 = vmatpush1.msra.mxu0 0.0
    %727 = vmatprep.subr.mxu0 0.0
    %728 = vmatpush1.msra.mxu0 0.0
    %729 = vmatprep.subr.mxu0 0.0
    %730 = vmatpush1.msra.mxu0 0.0
    %731 = vmatprep.subr.mxu0 0.0
    %732 = vmatpush1.msra.mxu0 0.0
    %733 = vmatprep.subr.mxu0 0.0
    %734 = vmatpush1.msra.mxu0 0.0
    %735 = vmatprep.subr.mxu0 0.0
    %736 = vmatpush1.msra.mxu0 0.0
    %737 = vmatprep.subr.mxu0 0.0
    %738 = vmatpush1.msra.mxu0 0.0
    %739 = vmatprep.subr.mxu0 0.0
    %740 = vmatpush1.msra.mxu0 0.0
    %741 = vmatprep.subr.mxu0 0.0
    %742 = vmatpush1.msra.mxu0 0.0
    %743 = vmatprep.subr.mxu0 0.0
    %744 = vmatpush1.msra.mxu0 0.0
    %745 = vmatprep.subr.mxu0 0.0
    %746 = vmatpush1.msra.mxu0 0.0
    %747 = vmatprep.subr.mxu0 0.0
    %748 = vmatpush1.msra.mxu0 0.0
    %749 = vmatprep.subr.mxu0 0.0
    %750 = vmatpush1.msra.mxu0 0.0
    %751 = vmatprep.subr.mxu0 0.0
    %752 = vmatpush1.msra.mxu0 0.0
    %753 = vmatprep.subr.mxu0 0.0
    %754 = vmatpush1.msra.mxu0 0.0
    %755 = vmatprep.subr.mxu0 0.0
    %756 = vmatpush1.msra.mxu0 0.0
    %757 = vmatprep.subr.mxu0 0.0
    %758 = vmatpush1.msra.mxu0 0.0
    %759 = vmatprep.subr.mxu0 0.0
    %760 = vmatpush1.msra.mxu0 0.0
    %761 = vmatprep.subr.mxu0 0.0
    %762 = vmatpush1.msra.mxu0 0.0
    %763 = vmatprep.mubr.f32.mxu0 0.0
    %764 = vmatmul.mubr.f32.gmra.mrb[0].mxu0 %v697
    %v765 = vpop.f32.mrb[0].mxu0
    %v766 = vadd.f32 0.0, %v765
    %v767 = vpop.f32.mrb[0].mxu0
    %v768 = vadd.f32 0.0, %v767
    %769 = vdwg.mxu0
    %v770 = vadd.f32 %v331, %v766
    %v771 = vadd.f32 %v333, %v768
    %v772 = vxor.u32 %v770, 2147483648
    %v773 = vxor.u32 %v771, 2147483648
    %v774 = vmul.f32 %v772, 1.442695
    %v775 = vpow.pop %v774
    %v776 = vmul.f32 %v773, 1.442695
    %v777 = vpow.pop %v776
    %v778 = vadd.f32 %v775, 1.0
    %v779 = vadd.f32 %v777, 1.0
    %v780 = vrcp.pop %v778
    %v781 = vmul.f32 1.0, %v780
    %v782 = vrcp.pop %v779
    %v783 = vmul.f32 1.0, %v782
    %v784 = vmul.f32 %v781, %v382
    %v785 = vmul.f32 %v783, %v383
    %v786 = vadd.f32 %v784, %v384
    %v787 = vadd.f32 %v785, %v385
    %v788 = vmul.f32 %v786, %v691
    %v789 = vmul.f32 %v786, %v787
    %791 = vrot.lane.b32.xlu0 %v789, 64
    %v792 = vpop.permute.xlu0 %791
    %v794 = vadd.f32 %v788, %v792
    %v795 = vtanh.pop %v794
    %v796 = vmul.f32 %v787, %v795
    %798 = vrot.lane.b32.xlu0 %v796, 64
    %v799 = vpop.permute.xlu0 %798
    %v800 = vsel %vm386, %v799, 0
    %802 = vmatprep.subr.mxu0 %v360
    %803 = vmatpush1.msra.mxu0 %v359
    %804 = vmatprep.subr.mxu0 %v362
    %805 = vmatpush1.msra.mxu0 %v361
    %806 = vmatprep.subr.mxu0 %v364
    %807 = vmatpush1.msra.mxu0 %v363
    %808 = vmatprep.subr.mxu0 %v366
    %809 = vmatpush1.msra.mxu0 %v365
    %810 = vmatprep.subr.mxu0 %v368
    %811 = vmatpush1.msra.mxu0 %v367
    %812 = vmatprep.subr.mxu0 %v370
    %813 = vmatpush1.msra.mxu0 %v369
    %814 = vmatprep.subr.mxu0 %v372
    %815 = vmatpush1.msra.mxu0 %v371
    %816 = vmatprep.subr.mxu0 %v374
    %817 = vmatpush1.msra.mxu0 %v373
    %818 = vmatprep.subr.mxu0 0.0
    %819 = vmatpush1.msra.mxu0 0.0
    %820 = vmatprep.subr.mxu0 0.0
    %821 = vmatpush1.msra.mxu0 0.0
    %822 = vmatprep.subr.mxu0 0.0
    %823 = vmatpush1.msra.mxu0 0.0
    %824 = vmatprep.subr.mxu0 0.0
    %825 = vmatpush1.msra.mxu0 0.0
    %826 = vmatprep.subr.mxu0 0.0
    %827 = vmatpush1.msra.mxu0 0.0
    %828 = vmatprep.subr.mxu0 0.0
    %829 = vmatpush1.msra.mxu0 0.0
    %830 = vmatprep.subr.mxu0 0.0
    %831 = vmatpush1.msra.mxu0 0.0
    %832 = vmatprep.subr.mxu0 0.0
    %833 = vmatpush1.msra.mxu0 0.0
    %834 = vmatprep.subr.mxu0 0.0
    %835 = vmatpush1.msra.mxu0 0.0
    %836 = vmatprep.subr.mxu0 0.0
    %837 = vmatpush1.msra.mxu0 0.0
    %838 = vmatprep.subr.mxu0 0.0
    %839 = vmatpush1.msra.mxu0 0.0
    %840 = vmatprep.subr.mxu0 0.0
    %841 = vmatpush1.msra.mxu0 0.0
    %842 = vmatprep.subr.mxu0 0.0
    %843 = vmatpush1.msra.mxu0 0.0
    %844 = vmatprep.subr.mxu0 0.0
    %845 = vmatpush1.msra.mxu0 0.0
    %846 = vmatprep.subr.mxu0 0.0
    %847 = vmatpush1.msra.mxu0 0.0
    %848 = vmatprep.subr.mxu0 0.0
    %849 = vmatpush1.msra.mxu0 0.0
    %850 = vmatprep.subr.mxu0 0.0
    %851 = vmatpush1.msra.mxu0 0.0
    %852 = vmatprep.subr.mxu0 0.0
    %853 = vmatpush1.msra.mxu0 0.0
    %854 = vmatprep.subr.mxu0 0.0
    %855 = vmatpush1.msra.mxu0 0.0
    %856 = vmatprep.subr.mxu0 0.0
    %857 = vmatpush1.msra.mxu0 0.0
    %858 = vmatprep.subr.mxu0 0.0
    %859 = vmatpush1.msra.mxu0 0.0
    %860 = vmatprep.subr.mxu0 0.0
    %861 = vmatpush1.msra.mxu0 0.0
    %862 = vmatprep.subr.mxu0 0.0
    %863 = vmatpush1.msra.mxu0 0.0
    %864 = vmatprep.subr.mxu0 0.0
    %865 = vmatpush1.msra.mxu0 0.0
    %866 = vmatprep.mubr.f32.mxu0 0.0
    %867 = vmatmul.mubr.f32.gmra.mrb[0].mxu0 %v800
    %v868 = vpop.f32.mrb[0].mxu0
    %v869 = vadd.f32 0.0, %v868
    %v870 = vpop.f32.mrb[0].mxu0
    %v871 = vadd.f32 0.0, %v870
    %872 = vdwg.mxu0
    %v873 = vadd.f32 %v337, %v869
    %v874 = vadd.f32 %v339, %v871
    %v875 = vxor.u32 %v873, 2147483648
    %v876 = vxor.u32 %v874, 2147483648
    %v877 = vmul.f32 %v875, 1.442695
    %v878 = vpow.pop %v877
    %v879 = vmul.f32 %v876, 1.442695
    %v880 = vpow.pop %v879
    %v881 = vadd.f32 %v878, 1.0
    %v882 = vadd.f32 %v880, 1.0
    %v883 = vrcp.pop %v881
    %v884 = vmul.f32 1.0, %v883
    %v885 = vrcp.pop %v882
    %v886 = vmul.f32 1.0, %v885
    %v887 = vmul.f32 %v884, %v382
    %v888 = vmul.f32 %v886, %v383
    %v889 = vadd.f32 %v887, %v384
    %v890 = vadd.f32 %v888, %v385
    %v891 = vmul.f32 %v889, %v794
    %v892 = vmul.f32 %v889, %v890
    %894 = vrot.lane.b32.xlu0 %v892, 64
    %v895 = vpop.permute.xlu0 %894
    %v897 = vadd.f32 %v891, %v895
    %v898 = vtanh.pop %v897
    %v899 = vmul.f32 %v890, %v898
    %901 = vrot.lane.b32.xlu0 %v899, 64
    %v902 = vpop.permute.xlu0 %901
    %v903 = vsel %vm386, %v902, 0
    %905 = vmatprep.subr.mxu0 %v360
    %906 = vmatpush1.msra.mxu0 %v359
    %907 = vmatprep.subr.mxu0 %v362
    %908 = vmatpush1.msra.mxu0 %v361
    %909 = vmatprep.subr.mxu0 %v364
    %910 = vmatpush1.msra.mxu0 %v363
    %911 = vmatprep.subr.mxu0 %v366
    %912 = vmatpush1.msra.mxu0 %v365
    %913 = vmatprep.subr.mxu0 %v368
    %914 = vmatpush1.msra.mxu0 %v367
    %915 = vmatprep.subr.mxu0 %v370
    %916 = vmatpush1.msra.mxu0 %v369
    %917 = vmatprep.subr.mxu0 %v372
    %918 = vmatpush1.msra.mxu0 %v371
    %919 = vmatprep.subr.mxu0 %v374
    %920 = vmatpush1.msra.mxu0 %v373
    %921 = vmatprep.subr.mxu0 0.0
    %922 = vmatpush1.msra.mxu0 0.0
    %923 = vmatprep.subr.mxu0 0.0
    %924 = vmatpush1.msra.mxu0 0.0
    %925 = vmatprep.subr.mxu0 0.0
    %926 = vmatpush1.msra.mxu0 0.0
    %927 = vmatprep.subr.mxu0 0.0
    %928 = vmatpush1.msra.mxu0 0.0
    %929 = vmatprep.subr.mxu0 0.0
    %930 = vmatpush1.msra.mxu0 0.0
    %931 = vmatprep.subr.mxu0 0.0
    %932 = vmatpush1.msra.mxu0 0.0
    %933 = vmatprep.subr.mxu0 0.0
    %934 = vmatpush1.msra.mxu0 0.0
    %935 = vmatprep.subr.mxu0 0.0
    %936 = vmatpush1.msra.mxu0 0.0
    %937 = vmatprep.subr.mxu0 0.0
    %938 = vmatpush1.msra.mxu0 0.0
    %939 = vmatprep.subr.mxu0 0.0
    %940 = vmatpush1.msra.mxu0 0.0
    %941 = vmatprep.subr.mxu0 0.0
    %942 = vmatpush1.msra.mxu0 0.0
    %943 = vmatprep.subr.mxu0 0.0
    %944 = vmatpush1.msra.mxu0 0.0
    %945 = vmatprep.subr.mxu0 0.0
    %946 = vmatpush1.msra.mxu0 0.0
    %947 = vmatprep.subr.mxu0 0.0
    %948 = vmatpush1.msra.mxu0 0.0
    %949 = vmatprep.subr.mxu0 0.0
    %950 = vmatpush1.msra.mxu0 0.0
    %951 = vmatprep.subr.mxu0 0.0
    %952 = vmatpush1.msra.mxu0 0.0
    %953 = vmatprep.subr.mxu0 0.0
    %954 = vmatpush1.msra.mxu0 0.0
    %955 = vmatprep.subr.mxu0 0.0
    %956 = vmatpush1.msra.mxu0 0.0
    %957 = vmatprep.subr.mxu0 0.0
    %958 = vmatpush1.msra.mxu0 0.0
    %959 = vmatprep.subr.mxu0 0.0
    %960 = vmatpush1.msra.mxu0 0.0
    %961 = vmatprep.subr.mxu0 0.0
    %962 = vmatpush1.msra.mxu0 0.0
    %963 = vmatprep.subr.mxu0 0.0
    %964 = vmatpush1.msra.mxu0 0.0
    %965 = vmatprep.subr.mxu0 0.0
    %966 = vmatpush1.msra.mxu0 0.0
    %967 = vmatprep.subr.mxu0 0.0
    %968 = vmatpush1.msra.mxu0 0.0
    %969 = vmatprep.mubr.f32.mxu0 0.0
    %970 = vmatmul.mubr.f32.gmra.mrb[0].mxu0 %v903
    %v971 = vpop.f32.mrb[0].mxu0
    %v972 = vadd.f32 0.0, %v971
    %v973 = vpop.f32.mrb[0].mxu0
    %v974 = vadd.f32 0.0, %v973
    %975 = vdwg.mxu0
    %v976 = vadd.f32 %v343, %v972
    %v977 = vadd.f32 %v345, %v974
    %v978 = vxor.u32 %v976, 2147483648
    %v979 = vxor.u32 %v977, 2147483648
    %v980 = vmul.f32 %v978, 1.442695
    %v981 = vpow.pop %v980
    %v982 = vmul.f32 %v979, 1.442695
    %v983 = vpow.pop %v982
    %v984 = vadd.f32 %v981, 1.0
    %v985 = vadd.f32 %v983, 1.0
    %v986 = vrcp.pop %v984
    %v987 = vmul.f32 1.0, %v986
    %v988 = vrcp.pop %v985
    %v989 = vmul.f32 1.0, %v988
    %v990 = vmul.f32 %v987, %v382
    %v991 = vmul.f32 %v989, %v383
    %v992 = vadd.f32 %v990, %v384
    %v993 = vadd.f32 %v991, %v385
    %v994 = vmul.f32 %v992, %v897
    %v995 = vmul.f32 %v992, %v993
    %997 = vrot.lane.b32.xlu0 %v995, 64
    %v998 = vpop.permute.xlu0 %997
    %v1000 = vadd.f32 %v994, %v998
    %v1001 = vtanh.pop %v1000
    %v1002 = vmul.f32 %v993, %v1001
    %1004 = vrot.lane.b32.xlu0 %v1002, 64
    %v1005 = vpop.permute.xlu0 %1004
    %v1006 = vsel %vm386, %v1005, 0
    %1008 = vmatprep.subr.mxu0 %v360
    %1009 = vmatpush1.msra.mxu0 %v359
    %1010 = vmatprep.subr.mxu0 %v362
    %1011 = vmatpush1.msra.mxu0 %v361
    %1012 = vmatprep.subr.mxu0 %v364
    %1013 = vmatpush1.msra.mxu0 %v363
    %1014 = vmatprep.subr.mxu0 %v366
    %1015 = vmatpush1.msra.mxu0 %v365
    %1016 = vmatprep.subr.mxu0 %v368
    %1017 = vmatpush1.msra.mxu0 %v367
    %1018 = vmatprep.subr.mxu0 %v370
    %1019 = vmatpush1.msra.mxu0 %v369
    %1020 = vmatprep.subr.mxu0 %v372
    %1021 = vmatpush1.msra.mxu0 %v371
    %1022 = vmatprep.subr.mxu0 %v374
    %1023 = vmatpush1.msra.mxu0 %v373
    %1024 = vmatprep.subr.mxu0 0.0
    %1025 = vmatpush1.msra.mxu0 0.0
    %1026 = vmatprep.subr.mxu0 0.0
    %1027 = vmatpush1.msra.mxu0 0.0
    %1028 = vmatprep.subr.mxu0 0.0
    %1029 = vmatpush1.msra.mxu0 0.0
    %1030 = vmatprep.subr.mxu0 0.0
    %1031 = vmatpush1.msra.mxu0 0.0
    %1032 = vmatprep.subr.mxu0 0.0
    %1033 = vmatpush1.msra.mxu0 0.0
    %1034 = vmatprep.subr.mxu0 0.0
    %1035 = vmatpush1.msra.mxu0 0.0
    %1036 = vmatprep.subr.mxu0 0.0
    %1037 = vmatpush1.msra.mxu0 0.0
    %1038 = vmatprep.subr.mxu0 0.0
    %1039 = vmatpush1.msra.mxu0 0.0
    %1040 = vmatprep.subr.mxu0 0.0
    %1041 = vmatpush1.msra.mxu0 0.0
    %1042 = vmatprep.subr.mxu0 0.0
    %1043 = vmatpush1.msra.mxu0 0.0
    %1044 = vmatprep.subr.mxu0 0.0
    %1045 = vmatpush1.msra.mxu0 0.0
    %1046 = vmatprep.subr.mxu0 0.0
    %1047 = vmatpush1.msra.mxu0 0.0
    %1048 = vmatprep.subr.mxu0 0.0
    %1049 = vmatpush1.msra.mxu0 0.0
    %1050 = vmatprep.subr.mxu0 0.0
    %1051 = vmatpush1.msra.mxu0 0.0
    %1052 = vmatprep.subr.mxu0 0.0
    %1053 = vmatpush1.msra.mxu0 0.0
    %1054 = vmatprep.subr.mxu0 0.0
    %1055 = vmatpush1.msra.mxu0 0.0
    %1056 = vmatprep.subr.mxu0 0.0
    %1057 = vmatpush1.msra.mxu0 0.0
    %1058 = vmatprep.subr.mxu0 0.0
    %1059 = vmatpush1.msra.mxu0 0.0
    %1060 = vmatprep.subr.mxu0 0.0
    %1061 = vmatpush1.msra.mxu0 0.0
    %1062 = vmatprep.subr.mxu0 0.0
    %1063 = vmatpush1.msra.mxu0 0.0
    %1064 = vmatprep.subr.mxu0 0.0
    %1065 = vmatpush1.msra.mxu0 0.0
    %1066 = vmatprep.subr.mxu0 0.0
    %1067 = vmatpush1.msra.mxu0 0.0
    %1068 = vmatprep.subr.mxu0 0.0
    %1069 = vmatpush1.msra.mxu0 0.0
    %1070 = vmatprep.subr.mxu0 0.0
    %1071 = vmatpush1.msra.mxu0 0.0
    %1072 = vmatprep.mubr.f32.mxu0 0.0
    %1073 = vmatmul.mubr.f32.gmra.mrb[0].mxu0 %v1006
    %v1074 = vpop.f32.mrb[0].mxu0
    %v1075 = vadd.f32 0.0, %v1074
    %v1076 = vpop.f32.mrb[0].mxu0
    %v1077 = vadd.f32 0.0, %v1076
    %1078 = vdwg.mxu0
    %v1079 = vadd.f32 %v349, %v1075
    %v1080 = vadd.f32 %v351, %v1077
    %v1081 = vxor.u32 %v1079, 2147483648
    %v1082 = vxor.u32 %v1080, 2147483648
    %v1083 = vmul.f32 %v1081, 1.442695
    %v1084 = vpow.pop %v1083
    %v1085 = vmul.f32 %v1082, 1.442695
    %v1086 = vpow.pop %v1085
    %v1087 = vadd.f32 %v1084, 1.0
    %v1088 = vadd.f32 %v1086, 1.0
    %v1089 = vrcp.pop %v1087
    %v1090 = vmul.f32 1.0, %v1089
    %v1091 = vrcp.pop %v1088
    %v1092 = vmul.f32 1.0, %v1091
    %v1093 = vmul.f32 %v1090, %v382
    %v1094 = vmul.f32 %v1092, %v383
    %v1095 = vadd.f32 %v1093, %v384
    %v1096 = vadd.f32 %v1094, %v385
    %v1097 = vmul.f32 %v1095, %v1000
    %v1098 = vmul.f32 %v1095, %v1096
    %1100 = vrot.lane.b32.xlu0 %v1098, 64
    %v1101 = vpop.permute.xlu0 %1100
    %v1103 = vadd.f32 %v1097, %v1101
    %v1104 = vtanh.pop %v1103
    %v1105 = vmul.f32 %v1096, %v1104
    %1107 = vrot.lane.b32.xlu0 %v1105, 64
    %v1108 = vpop.permute.xlu0 %1107
    %v1109 = vsel %vm386, %v1108, 0
    %1111 = vmatprep.subr.mxu0 %v360
    %1112 = vmatpush1.msra.mxu0 %v359
    %1113 = vmatprep.subr.mxu0 %v362
    %1114 = vmatpush1.msra.mxu0 %v361
    %1115 = vmatprep.subr.mxu0 %v364
    %1116 = vmatpush1.msra.mxu0 %v363
    %1117 = vmatprep.subr.mxu0 %v366
    %1118 = vmatpush1.msra.mxu0 %v365
    %1119 = vmatprep.subr.mxu0 %v368
    %1120 = vmatpush1.msra.mxu0 %v367
    %1121 = vmatprep.subr.mxu0 %v370
    %1122 = vmatpush1.msra.mxu0 %v369
    %1123 = vmatprep.subr.mxu0 %v372
    %1124 = vmatpush1.msra.mxu0 %v371
    %1125 = vmatprep.subr.mxu0 %v374
    %1126 = vmatpush1.msra.mxu0 %v373
    %1127 = vmatprep.subr.mxu0 0.0
    %1128 = vmatpush1.msra.mxu0 0.0
    %1129 = vmatprep.subr.mxu0 0.0
    %1130 = vmatpush1.msra.mxu0 0.0
    %1131 = vmatprep.subr.mxu0 0.0
    %1132 = vmatpush1.msra.mxu0 0.0
    %1133 = vmatprep.subr.mxu0 0.0
    %1134 = vmatpush1.msra.mxu0 0.0
    %1135 = vmatprep.subr.mxu0 0.0
    %1136 = vmatpush1.msra.mxu0 0.0
    %1137 = vmatprep.subr.mxu0 0.0
    %1138 = vmatpush1.msra.mxu0 0.0
    %1139 = vmatprep.subr.mxu0 0.0
    %1140 = vmatpush1.msra.mxu0 0.0
    %1141 = vmatprep.subr.mxu0 0.0
    %1142 = vmatpush1.msra.mxu0 0.0
    %1143 = vmatprep.subr.mxu0 0.0
    %1144 = vmatpush1.msra.mxu0 0.0
    %1145 = vmatprep.subr.mxu0 0.0
    %1146 = vmatpush1.msra.mxu0 0.0
    %1147 = vmatprep.subr.mxu0 0.0
    %1148 = vmatpush1.msra.mxu0 0.0
    %1149 = vmatprep.subr.mxu0 0.0
    %1150 = vmatpush1.msra.mxu0 0.0
    %1151 = vmatprep.subr.mxu0 0.0
    %1152 = vmatpush1.msra.mxu0 0.0
    %1153 = vmatprep.subr.mxu0 0.0
    %1154 = vmatpush1.msra.mxu0 0.0
    %1155 = vmatprep.subr.mxu0 0.0
    %1156 = vmatpush1.msra.mxu0 0.0
    %1157 = vmatprep.subr.mxu0 0.0
    %1158 = vmatpush1.msra.mxu0 0.0
    %1159 = vmatprep.subr.mxu0 0.0
    %1160 = vmatpush1.msra.mxu0 0.0
    %1161 = vmatprep.subr.mxu0 0.0
    %1162 = vmatpush1.msra.mxu0 0.0
    %1163 = vmatprep.subr.mxu0 0.0
    %1164 = vmatpush1.msra.mxu0 0.0
    %1165 = vmatprep.subr.mxu0 0.0
    %1166 = vmatpush1.msra.mxu0 0.0
    %1167 = vmatprep.subr.mxu0 0.0
    %1168 = vmatpush1.msra.mxu0 0.0
    %1169 = vmatprep.subr.mxu0 0.0
    %1170 = vmatpush1.msra.mxu0 0.0
    %1171 = vmatprep.subr.mxu0 0.0
    %1172 = vmatpush1.msra.mxu0 0.0
    %1173 = vmatprep.subr.mxu0 0.0
    %1174 = vmatpush1.msra.mxu0 0.0
    %1175 = vmatprep.mubr.f32.mxu0 0.0
    %1176 = vmatmul.mubr.f32.gmra.mrb[0].mxu0 %v1109
    %v1177 = vpop.f32.mrb[0].mxu0
    %v1178 = vadd.f32 0.0, %v1177
    %v1179 = vpop.f32.mrb[0].mxu0
    %v1180 = vadd.f32 0.0, %v1179
    %1181 = vdwg.mxu0
    %v1182 = vadd.f32 %v355, %v1178
    %v1183 = vadd.f32 %v357, %v1180
    %v1184 = vxor.u32 %v1182, 2147483648
    %v1185 = vxor.u32 %v1183, 2147483648
    %v1186 = vmul.f32 %v1184, 1.442695
    %v1187 = vpow.pop %v1186
    %v1188 = vmul.f32 %v1185, 1.442695
    %v1189 = vpow.pop %v1188
    %v1190 = vadd.f32 %v1187, 1.0
    %v1191 = vadd.f32 %v1189, 1.0
    %v1192 = vrcp.pop %v1190
    %v1193 = vmul.f32 1.0, %v1192
    %v1194 = vrcp.pop %v1191
    %v1195 = vmul.f32 1.0, %v1194
    %v1196 = vmul.f32 %v1193, %v382
    %v1197 = vmul.f32 %v1195, %v383
    %v1198 = vadd.f32 %v1196, %v384
    %v1199 = vadd.f32 %v1197, %v385
    %v1200 = vmul.f32 %v1198, %v1103
    %v1201 = vmul.f32 %v1198, %v1199
    %1203 = vrot.lane.b32.xlu0 %v1201, 64
    %v1204 = vpop.permute.xlu0 %1203
    %v1206 = vadd.f32 %v1200, %v1204
    %v1207 = vtanh.pop %v1206
    %v1208 = vmul.f32 %v1199, %v1207
    %v1209 = vld [vmem:[#allocation4] sm:$0xff]
    %v1210 = vld [vmem:[#allocation4 + $0x8] sm:$0xff]
    %v1211 = vld [vmem:[#allocation4 + $0x10] sm:$0xff]
    %v1212 = vld [vmem:[#allocation4 + $0x18] sm:$0xff]
    %v1213 = vld [vmem:[#allocation4 + $0x20] sm:$0xff]
    %v1214 = vld [vmem:[#allocation4 + $0x28] sm:$0xff]
    %v1215 = vld [vmem:[#allocation4 + $0x30] sm:$0xff]
    %v1216 = vld [vmem:[#allocation4 + $0x38] sm:$0xff]
    %v1217 = vld [vmem:[%s6] sm:$0x1]
    %v1219 = vlaneseq
    %v1220 = vshrl.u32 %v1219, 7
    %v1221 = vsub.s32 0, %v1220
    %v1222 = vrot.slane %v1217, %v1221
    %1225 = vrot.lane.b32.xlu0 %v1208, 64
    %v1226 = vpop.permute.xlu0 %1225
    %v1227 = vsel %vm386, %v1226, 0
    %1229 = vmatprep.subr.mxu0 0.0
    %1230 = vmatpush1.msra.mxu0 %v1209
    %1231 = vmatprep.subr.mxu0 0.0
    %1232 = vmatpush1.msra.mxu0 %v1210
    %1233 = vmatprep.subr.mxu0 0.0
    %1234 = vmatpush1.msra.mxu0 %v1211
    %1235 = vmatprep.subr.mxu0 0.0
    %1236 = vmatpush1.msra.mxu0 %v1212
    %1237 = vmatprep.subr.mxu0 0.0
    %1238 = vmatpush1.msra.mxu0 %v1213
    %1239 = vmatprep.subr.mxu0 0.0
    %1240 = vmatpush1.msra.mxu0 %v1214
    %1241 = vmatprep.subr.mxu0 0.0
    %1242 = vmatpush1.msra.mxu0 %v1215
    %1243 = vmatprep.subr.mxu0 0.0
    %1244 = vmatpush1.msra.mxu0 %v1216
    %1245 = vmatprep.subr.mxu0 0.0
    %1246 = vmatpush1.msra.mxu0 0.0
    %1247 = vmatprep.subr.mxu0 0.0
    %1248 = vmatpush1.msra.mxu0 0.0
    %1249 = vmatprep.subr.mxu0 0.0
    %1250 = vmatpush1.msra.mxu0 0.0
    %1251 = vmatprep.subr.mxu0 0.0
    %1252 = vmatpush1.msra.mxu0 0.0
    %1253 = vmatprep.subr.mxu0 0.0
    %1254 = vmatpush1.msra.mxu0 0.0
    %1255 = vmatprep.subr.mxu0 0.0
    %1256 = vmatpush1.msra.mxu0 0.0
    %1257 = vmatprep.subr.mxu0 0.0
    %1258 = vmatpush1.msra.mxu0 0.0
    %1259 = vmatprep.subr.mxu0 0.0
    %1260 = vmatpush1.msra.mxu0 0.0
    %1261 = vmatprep.subr.mxu0 0.0
    %1262 = vmatpush1.msra.mxu0 0.0
    %1263 = vmatprep.subr.mxu0 0.0
    %1264 = vmatpush1.msra.mxu0 0.0
    %1265 = vmatprep.subr.mxu0 0.0
    %1266 = vmatpush1.msra.mxu0 0.0
    %1267 = vmatprep.subr.mxu0 0.0
    %1268 = vmatpush1.msra.mxu0 0.0
    %1269 = vmatprep.subr.mxu0 0.0
    %1270 = vmatpush1.msra.mxu0 0.0
    %1271 = vmatprep.subr.mxu0 0.0
    %1272 = vmatpush1.msra.mxu0 0.0
    %1273 = vmatprep.subr.mxu0 0.0
    %1274 = vmatpush1.msra.mxu0 0.0
    %1275 = vmatprep.subr.mxu0 0.0
    %1276 = vmatpush1.msra.mxu0 0.0
    %1277 = vmatprep.subr.mxu0 0.0
    %1278 = vmatpush1.msra.mxu0 0.0
    %1279 = vmatprep.subr.mxu0 0.0
    %1280 = vmatpush1.msra.mxu0 0.0
    %1281 = vmatprep.subr.mxu0 0.0
    %1282 = vmatpush1.msra.mxu0 0.0
    %1283 = vmatprep.subr.mxu0 0.0
    %1284 = vmatpush1.msra.mxu0 0.0
    %1285 = vmatprep.subr.mxu0 0.0
    %1286 = vmatpush1.msra.mxu0 0.0
    %1287 = vmatprep.subr.mxu0 0.0
    %1288 = vmatpush1.msra.mxu0 0.0
    %1289 = vmatprep.subr.mxu0 0.0
    %1290 = vmatpush1.msra.mxu0 0.0
    %1291 = vmatprep.subr.mxu0 0.0
    %1292 = vmatpush1.msra.mxu0 0.0
    %1293 = vmatprep.mubr.f32.mxu0 0.0
    %1294 = vmatmul.mubr.f32.gmra.mrb[0].mxu0 %v1227
    %v1295 = vpop.f32.mrb[0].mxu0
    %v1296 = vadd.f32 %v1222, %v1295
    %v1297 = vpop.f32.mrb[0].mxu0
    %1298 = vdwg.mxu0
    %v1299 = vxor.u32 %v1296, 2147483648
    %v1300 = vmul.f32 %v1299, 1.442695
    %v1301 = vpow.pop %v1300
    %v1302 = vadd.f32 %v1301, 1.0
    %v1303 = vrcp.pop %v1302
    %v1304 = vmul.f32 1.0, %v1303
    %1305 = vst [vmem:[%s7] sm:$0xff] %v1304
    // Predicated region
    $region38: #{quest_forward.1} parent=1 // pred_check
      _
    $region39: #{quest_forward.1} parent=1 // pred_check_branch
      %1307 = sbr.rel (0) target = $region41
    $region40: #{quest_forward.1} parent=1 // pred_region
      _
    $region41: #{quest_forward.1} parent=1 // pred_fallthru
      _
    // Predicated region
    $region42: #{quest_forward.1} parent=1 // pred_check
      _
    $region43: #{quest_forward.1} parent=1 // pred_check_branch
      %1309 = sbr.rel (0) target = $region45
    $region44: #{quest_forward.1} parent=1 // pred_region
      _
    $region45: #{quest_forward.1} parent=1 // pred_fallthru
      _
    %1310 = vsyncpa [#allocation3], 1
    %1311 = vsyncpa [#allocation5], 1

</llo_original>
